<compile_context>
chip_gen: v7x
topology: tpu7x:2x2x1
jax: 0.10.0
libtpu: 0.0.40
codegen_flags: <defaults>
</compile_context>

<pallas_src>
import functools

import jax
import jax.numpy as jnp
import numpy as np
from jax import lax
from jax.experimental import pallas as pl
from jax.experimental.pallas import tpu as pltpu

F32 = jnp.float32
BF16 = jnp.bfloat16


# ----------------------------- shared math helpers (pure jnp/lax) -----------------------------

def _layernorm(x, w, b, eps=1e-5):
    x = x.astype(F32)
    mean = jnp.mean(x, axis=-1, keepdims=True)
    var = jnp.mean((x - mean) ** 2, axis=-1, keepdims=True)
    return (x - mean) * lax.rsqrt(var + eps) * w + b


def _mm_bt(a, w):
    # a: (M, K), w: (N, K) -> a @ w.T : (M, N); bf16 MXU inputs, f32 accumulation.
    return lax.dot_general(a.astype(BF16), w.astype(BF16),
                           (((1,), (1,)), ((), ())),
                           preferred_element_type=F32)


def _mm(a, b):
    # a: (M, K), b: (K, N) -> (M, N); bf16 MXU inputs, f32 accumulation.
    return lax.dot_general(a.astype(BF16), b.astype(BF16),
                           (((1,), (0,)), ((), ())),
                           preferred_element_type=F32)


# ----------------------------- transformer block kernel -----------------------------

def block_kernel(x_ref,
                 ln1w_ref, ln1b_ref,
                 wqkv_ref, bqkv_ref, wproj_ref, bproj_ref,
                 ln2w_ref, ln2b_ref,
                 w1_ref, b1_ref, w2_ref, b2_ref, w3_ref, b3_ref,
                 out_ref,
                 qkv_scr, o_scr,
                 *, heads, head_dim):
    x = x_ref[0]                                   # (S, D) f32
    D = heads * head_dim
    scale = head_dim ** (-0.5)

    # ---------------- attention (pre-LN) ----------------
    y = _layernorm(x, ln1w_ref[...], ln1b_ref[...])

    # Fused QKV projection: one (S, 3D) matmul on the MXU, staged in VMEM scratch.
    qkv_scr[...] = _mm_bt(y, wqkv_ref[...]) + bqkv_ref[...]

    for h in range(heads):                         # static unroll over heads
        r0, r1 = h * head_dim, (h + 1) * head_dim
        q = qkv_scr[:, r0:r1]                      # (S, hd) f32
        k = qkv_scr[:, D + r0:D + r1]
        v = qkv_scr[:, 2 * D + r0:2 * D + r1]

        s = _mm_bt(q * scale, k)                   # (S, S) = (q*scale) @ k^T, f32 acc
        s = s - jnp.max(s, axis=-1, keepdims=True)
        p = jnp.exp(s)
        denom = jnp.sum(p, axis=-1, keepdims=True)
        p = p * pl.reciprocal(denom, approx=True)  # EUP reciprocal, not a VALU divide

        # write this head's output head-major into the (S, D) scratch
        o_scr[:, r0:r1] = _mm(p, v)                # (S, hd)

    # single full-width output projection (K = D, MXU-efficient)
    x = x + _mm_bt(o_scr[...], wproj_ref[...]) + bproj_ref[...]

    # ---------------- SwiGLU MLP (pre-LN) ----------------
    y = _layernorm(x, ln2w_ref[...], ln2b_ref[...])
    h1 = _mm_bt(y, w1_ref[...]) + b1_ref[...]      # (S, H)
    h2 = _mm_bt(y, w2_ref[...]) + b2_ref[...]      # (S, H)
    hidden = h1 * jax.nn.sigmoid(h1) * h2          # silu(w1 x) * (w2 x), f32
    out_ref[0] = x + _mm_bt(hidden, w3_ref[...]) + b3_ref[...]


# ----------------------------- final norm + tied lm_head kernel (vocab-tiled) -----------------------------

def lm_head_kernel(x_ref, lnw_ref, lnb_ref, emb_ref, out_ref):
    y = _layernorm(x_ref[...], lnw_ref[...], lnb_ref[...])   # (TM, D)
    out_ref[...] = _mm_bt(y, emb_ref[...])                   # (TM, TN) tied weights: y @ E^T


# ----------------------------- pallas_call wrappers -----------------------------

def _param_spec(p):
    return pl.BlockSpec(p.shape, lambda b: (0,) * p.ndim)


def run_block(x, blk, heads, head_dim):
    B, S, D = x.shape
    mlp_dim = blk["w1"].shape[0]
    plist = [blk["ln1_w"], blk["ln1_b"],
             blk["wqkv"], blk["bqkv"], blk["wproj"], blk["bproj"],
             blk["ln2_w"], blk["ln2_b"],
             blk["w1"], blk["b1"], blk["w2"], blk["b2"], blk["w3"], blk["b3"]]

    hd = head_dim
    flops = B * (2 * S * D * 3 * D            # fused qkv
                 + heads * 4 * S * S * hd     # scores + PV
                 + 2 * S * D * D              # output projection
                 + 4 * S * D * mlp_dim        # w1 + w2
                 + 2 * S * mlp_dim * D)       # w3
    transcendentals = B * (heads * S * S + S * mlp_dim)
    bytes_accessed = (2 * B * S * D * 4                                   # x in/out (f32)
                      + (3 * D * D + D * D + 3 * mlp_dim * D) * 2          # bf16 weights
                      + (3 * D + 2 * D + 2 * mlp_dim + 4 * D) * 4)         # biases / LN params

    return pl.pallas_call(
        functools.partial(block_kernel, heads=heads, head_dim=head_dim),
        out_shape=jax.ShapeDtypeStruct((B, S, D), jnp.float32),
        grid=(B,),
        in_specs=[pl.BlockSpec((1, S, D), lambda b: (b, 0, 0))]
                 + [_param_spec(p) for p in plist],
        out_specs=pl.BlockSpec((1, S, D), lambda b: (b, 0, 0)),
        scratch_shapes=[pltpu.VMEM((S, 3 * D), jnp.float32),   # staged fused-QKV result
                        pltpu.VMEM((S, D), jnp.float32)],      # head-major attention output
        compiler_params=pltpu.CompilerParams(dimension_semantics=("parallel",)),
        cost_estimate=pl.CostEstimate(flops=flops, transcendentals=transcendentals,
                                      bytes_accessed=bytes_accessed),
    )(x, *plist)


def run_lm_head(x, ln_w, ln_b, emb):
    B, S, D = x.shape
    V = emb.shape[0]
    M = B * S
    x2 = x.reshape(M, D)                                  # fold batch into the row dimension

    TM = 256 if M % 256 == 0 else (128 if M % 128 == 0 else M)   # row tile
    TN = 256 if V % 256 == 0 else (128 if V % 128 == 0 else V)   # lane-dense vocab tile

    flops = 2 * M * D * V
    bytes_accessed = M * D * 4 + V * D * 2 + M * V * 4

    out = pl.pallas_call(
        lm_head_kernel,
        out_shape=jax.ShapeDtypeStruct((M, V), jnp.float32),
        grid=(M // TM, V // TN),
        in_specs=[pl.BlockSpec((TM, D), lambda i, j: (i, 0)),
                  pl.BlockSpec((1, D), lambda i, j: (0, 0)),
                  pl.BlockSpec((1, D), lambda i, j: (0, 0)),
                  pl.BlockSpec((TN, D), lambda i, j: (j, 0))],
        out_specs=pl.BlockSpec((TM, TN), lambda i, j: (i, j)),
        compiler_params=pltpu.CompilerParams(
            dimension_semantics=("parallel", "parallel")),
        cost_estimate=pl.CostEstimate(flops=flops, transcendentals=0,
                                      bytes_accessed=bytes_accessed),
    )(x2, ln_w, ln_b, emb)
    return out.reshape(B, S, V)


# ----------------------------- model: params + forward -----------------------------

def init_params(key, vocab_size, dim, depth, heads, mlp_dim, max_seq_len):
    std = 0.02
    n_keys = 1 + depth * 5
    keys = jax.random.split(key, n_keys)
    ki = iter(range(n_keys))

    def w(shape, k):
        # matmul weights stored bf16 (halves HBM/VMEM traffic; f32 accumulation in kernels)
        return (std * jax.random.normal(k, shape, jnp.float32)).astype(BF16)

    params = {
        "emb": w((vocab_size, dim), keys[next(ki)]),
        "pos": jnp.zeros((1, max_seq_len, dim), jnp.float32),  # torch.zeros Parameter
        "lnf_w": jnp.ones((1, dim), jnp.float32),
        "lnf_b": jnp.zeros((1, dim), jnp.float32),
        "blocks": [],
    }
    for _ in range(depth):
        blk = {
            "ln1_w": jnp.ones((1, dim), jnp.float32),
            "ln1_b": jnp.zeros((1, dim), jnp.float32),
            "wqkv": w((3 * dim, dim), keys[next(ki)]),
            "bqkv": jnp.zeros((1, 3 * dim), jnp.float32),
            "wproj": w((dim, dim), keys[next(ki)]),
            "bproj": jnp.zeros((1, dim), jnp.float32),
            "ln2_w": jnp.ones((1, dim), jnp.float32),
            "ln2_b": jnp.zeros((1, dim), jnp.float32),
            "w1": w((mlp_dim, dim), keys[next(ki)]),
            "b1": jnp.zeros((1, mlp_dim), jnp.float32),
            "w2": w((mlp_dim, dim), keys[next(ki)]),
            "b2": jnp.zeros((1, mlp_dim), jnp.float32),
            "w3": w((dim, mlp_dim), keys[next(ki)]),
            "b3": jnp.zeros((1, dim), jnp.float32),
        }
        params["blocks"].append(blk)
    return params


def gemini_flash_forward(token_ids, params, heads, head_dim):
    # token_ids: (B, S) int32
    B, S = token_ids.shape
    x = jnp.take(params["emb"], token_ids, axis=0).astype(F32) + params["pos"][:, :S, :]
    # TODO(synk): embedding-dropout is identity (eval mode).
    for blk in params["blocks"]:
        x = run_block(x, blk, heads, head_dim)
    return run_lm_head(x, params["lnf_w"], params["lnf_b"], params["emb"])


# ----------------------------- pure-JAX reference (same bf16-matmul convention) -----------------------------

def _linear_ref(a, w, b=None):
    out = jnp.einsum("...k,nk->...n", a.astype(BF16), w.astype(BF16),
                     preferred_element_type=F32)
    return out if b is None else out + b


def reference_forward(token_ids, params, heads, head_dim):
    B, S = token_ids.shape
    D = heads * head_dim
    scale = head_dim ** (-0.5)
    x = jnp.take(params["emb"], token_ids, axis=0).astype(F32) + params["pos"][:, :S, :]
    for blk in params["blocks"]:
        y = _layernorm(x, blk["ln1_w"], blk["ln1_b"])
        qkv = _linear_ref(y, blk["wqkv"], blk["bqkv"])                      # (B,S,3D)
        q = qkv[..., :D].reshape(B, S, heads, head_dim)
        k = qkv[..., D:2 * D].reshape(B, S, heads, head_dim)
        v = qkv[..., 2 * D:].reshape(B, S, heads, head_dim)
        s = jnp.einsum("bqhd,bkhd->bhqk", (q * scale).astype(BF16), k.astype(BF16),
                       preferred_element_type=F32)
        s = s - jnp.max(s, axis=-1, keepdims=True)
        p = jnp.exp(s)
        p = p / jnp.sum(p, axis=-1, keepdims=True)
        o = jnp.einsum("bhqk,bkhd->bqhd", p.astype(BF16), v.astype(BF16),
                       preferred_element_type=F32).reshape(B, S, D)
        x = x + _linear_ref(o, blk["wproj"], blk["bproj"])
        y = _layernorm(x, blk["ln2_w"], blk["ln2_b"])
        h1 = _linear_ref(y, blk["w1"], blk["b1"])
        h2 = _linear_ref(y, blk["w2"], blk["b2"])
        x = x + _linear_ref(jax.nn.silu(h1) * h2, blk["w3"], blk["b3"])
    y = _layernorm(x, params["lnf_w"], params["lnf_b"])
    return _linear_ref(y, params["emb"])


# ----------------------------- main -----------------------------

if __name__ == "__main__":
    # small shapes consistent with the module
    VOCAB, DIM, DEPTH, HEADS, MLP_DIM, MAX_SEQ = 64, 32, 2, 4, 64, 16
    HEAD_DIM = DIM // HEADS
    B, S = 2, 8

    key = jax.random.PRNGKey(0)
    k_param, k_tok = jax.random.split(key)
    params = init_params(k_param, VOCAB, DIM, DEPTH, HEADS, MLP_DIM, MAX_SEQ)
    token_ids = jax.random.randint(k_tok, (B, S), 0, VOCAB, dtype=jnp.int32)

    logits = jax.block_until_ready(gemini_flash_forward(token_ids, params, HEADS, HEAD_DIM))
    ref = jax.block_until_ready(reference_forward(token_ids, params, HEADS, HEAD_DIM))

    assert logits.shape == (B, S, VOCAB), logits.shape
    # tolerance accounts for approx-EUP reciprocal in the kernel's softmax vs exact divide in ref
    np.testing.assert_allclose(np.asarray(logits), np.asarray(ref), rtol=2e-2, atol=2e-2)

    print("KERNEL_OK")
</pallas_src>

<mosaic_0001>
module attributes {stable_mosaic.version = 11 : i64} {
  func.func @block_kernel(%arg0: i32, %arg1: memref<1x8x32xf32, #tpu.memory_space<vmem>>, %arg2: memref<1x32xf32, #tpu.memory_space<vmem>>, %arg3: memref<1x32xf32, #tpu.memory_space<vmem>>, %arg4: memref<96x32xbf16, #tpu.memory_space<vmem>>, %arg5: memref<1x96xf32, #tpu.memory_space<vmem>>, %arg6: memref<32x32xbf16, #tpu.memory_space<vmem>>, %arg7: memref<1x32xf32, #tpu.memory_space<vmem>>, %arg8: memref<1x32xf32, #tpu.memory_space<vmem>>, %arg9: memref<1x32xf32, #tpu.memory_space<vmem>>, %arg10: memref<64x32xbf16, #tpu.memory_space<vmem>>, %arg11: memref<1x64xf32, #tpu.memory_space<vmem>>, %arg12: memref<64x32xbf16, #tpu.memory_space<vmem>>, %arg13: memref<1x64xf32, #tpu.memory_space<vmem>>, %arg14: memref<32x64xbf16, #tpu.memory_space<vmem>>, %arg15: memref<1x32xf32, #tpu.memory_space<vmem>>, %arg16: memref<1x8x32xf32, #tpu.memory_space<vmem>>, %arg17: memref<8x96xf32, #tpu.memory_space<vmem>>, %arg18: memref<8x32xf32, #tpu.memory_space<vmem>>) attributes {dimension_semantics = [#tpu.dimension_semantics<parallel>], iteration_bounds = array<i64: 2>, scalar_prefetch = 0 : i64, scratch_operands = 2 : i64, tpu.core_type = #tpu.core_type<tc>, window_params = [{transform_indices = @transform_0, window_bounds = array<i64: 1, 8, 32>}, {pipeline_mode = #tpu.pipeline_mode<synchronous>, transform_indices = @transform_1, window_bounds = array<i64: 1, 32>}, {pipeline_mode = #tpu.pipeline_mode<synchronous>, transform_indices = @transform_2, window_bounds = array<i64: 1, 32>}, {pipeline_mode = #tpu.pipeline_mode<synchronous>, transform_indices = @transform_3, window_bounds = array<i64: 96, 32>}, {pipeline_mode = #tpu.pipeline_mode<synchronous>, transform_indices = @transform_4, window_bounds = array<i64: 1, 96>}, {pipeline_mode = #tpu.pipeline_mode<synchronous>, transform_indices = @transform_5, window_bounds = array<i64: 32, 32>}, {pipeline_mode = #tpu.pipeline_mode<synchronous>, transform_indices = @transform_6, window_bounds = array<i64: 1, 32>}, {pipeline_mode = #tpu.pipeline_mode<synchronous>, transform_indices = @transform_7, window_bounds = array<i64: 1, 32>}, {pipeline_mode = #tpu.pipeline_mode<synchronous>, transform_indices = @transform_8, window_bounds = array<i64: 1, 32>}, {pipeline_mode = #tpu.pipeline_mode<synchronous>, transform_indices = @transform_9, window_bounds = array<i64: 64, 32>}, {pipeline_mode = #tpu.pipeline_mode<synchronous>, transform_indices = @transform_10, window_bounds = array<i64: 1, 64>}, {pipeline_mode = #tpu.pipeline_mode<synchronous>, transform_indices = @transform_11, window_bounds = array<i64: 64, 32>}, {pipeline_mode = #tpu.pipeline_mode<synchronous>, transform_indices = @transform_12, window_bounds = array<i64: 1, 64>}, {pipeline_mode = #tpu.pipeline_mode<synchronous>, transform_indices = @transform_13, window_bounds = array<i64: 32, 64>}, {pipeline_mode = #tpu.pipeline_mode<synchronous>, transform_indices = @transform_14, window_bounds = array<i64: 1, 32>}, {transform_indices = @transform_15, window_bounds = array<i64: 1, 8, 32>}]} {
    %c0 = arith.constant 0 : index
    %c0_0 = arith.constant 0 : index
    %c0_1 = arith.constant 0 : index
    %0 = vector.load %arg1[%c0, %c0_0, %c0_1] : memref<1x8x32xf32, #tpu.memory_space<vmem>>, vector<1x8x32xf32>
    %1 = vector.shape_cast %0 : vector<1x8x32xf32> to vector<8x32xf32>
    %c0_2 = arith.constant 0 : index
    %c0_3 = arith.constant 0 : index
    %2 = vector.load %arg2[%c0_2, %c0_3] : memref<1x32xf32, #tpu.memory_space<vmem>>, vector<1x32xf32>
    %c0_4 = arith.constant 0 : index
    %c0_5 = arith.constant 0 : index
    %3 = vector.load %arg3[%c0_4, %c0_5] : memref<1x32xf32, #tpu.memory_space<vmem>>, vector<1x32xf32>
    %cst = arith.constant dense<0.000000e+00> : vector<8xf32>
    %4 = vector.multi_reduction <add>, %1, %cst [1] : vector<8x32xf32> to vector<8xf32>
    %5 = vector.shape_cast %4 : vector<8xf32> to vector<8x1xf32>
    %cst_6 = arith.constant 3.200000e+01 : f32
    %6 = vector.broadcast %cst_6 : f32 to vector<8x1xf32>
    %7 = arith.divf %5, %6 : vector<8x1xf32>
    %8 = vector.broadcast %7 : vector<8x1xf32> to vector<8x32xf32>
    %9 = arith.subf %1, %8 : vector<8x32xf32>
    %10 = arith.mulf %9, %9 : vector<8x32xf32>
    %cst_7 = arith.constant dense<0.000000e+00> : vector<8xf32>
    %11 = vector.multi_reduction <add>, %10, %cst_7 [1] : vector<8x32xf32> to vector<8xf32>
    %12 = vector.shape_cast %11 : vector<8xf32> to vector<8x1xf32>
    %cst_8 = arith.constant 3.200000e+01 : f32
    %13 = vector.broadcast %cst_8 : f32 to vector<8x1xf32>
    %14 = arith.divf %12, %13 : vector<8x1xf32>
    %15 = vector.broadcast %7 : vector<8x1xf32> to vector<8x32xf32>
    %16 = arith.subf %1, %15 : vector<8x32xf32>
    %cst_9 = arith.constant 9.99999974E-6 : f32
    %17 = vector.broadcast %cst_9 : f32 to vector<8x1xf32>
    %18 = arith.addf %14, %17 : vector<8x1xf32>
    %19 = math.rsqrt %18 : vector<8x1xf32>
    %20 = vector.broadcast %19 : vector<8x1xf32> to vector<8x32xf32>
    %21 = arith.mulf %16, %20 : vector<8x32xf32>
    %22 = vector.broadcast %2 : vector<1x32xf32> to vector<8x32xf32>
    %23 = arith.mulf %21, %22 : vector<8x32xf32>
    %24 = vector.broadcast %3 : vector<1x32xf32> to vector<8x32xf32>
    %25 = arith.addf %23, %24 : vector<8x32xf32>
    %c0_10 = arith.constant 0 : index
    %c0_11 = arith.constant 0 : index
    %26 = vector.load %arg4[%c0_10, %c0_11] : memref<96x32xbf16, #tpu.memory_space<vmem>>, vector<96x32xbf16>
    %27 = arith.truncf %25 : vector<8x32xf32> to vector<8x32xbf16>
    %cst_12 = arith.constant dense<0.000000e+00> : vector<8x96xf32>
    %28 = tpu.matmul %27, %26, %cst_12 {dimension_numbers = #tpu.dot_dimension_numbers<[1], [1], [0], [0], [0, 0, 1, 0], [], []>} : vector<8x32xbf16>, vector<96x32xbf16>, vector<8x96xf32> -> vector<8x96xf32>
    %c0_13 = arith.constant 0 : index
    %c0_14 = arith.constant 0 : index
    %29 = vector.load %arg5[%c0_13, %c0_14] : memref<1x96xf32, #tpu.memory_space<vmem>>, vector<1x96xf32>
    %30 = vector.broadcast %29 : vector<1x96xf32> to vector<8x96xf32>
    %31 = arith.addf %28, %30 : vector<8x96xf32>
    %c0_15 = arith.constant 0 : index
    %c0_16 = arith.constant 0 : index
    %32 = vector.load %arg17[%c0_15, %c0_16] : memref<8x96xf32, #tpu.memory_space<vmem>>, vector<8x96xf32>
    tpu.vector_store %arg17[%c0_15, %c0_16], %31 {strides = array<i32>} : memref<8x96xf32, #tpu.memory_space<vmem>>, vector<8x96xf32>,
    %c0_17 = arith.constant 0 : index
    %c0_18 = arith.constant 0 : index
    %33 = vector.load %arg17[%c0_17, %c0_18] : memref<8x96xf32, #tpu.memory_space<vmem>>, vector<8x8xf32>
    %c0_19 = arith.constant 0 : index
    %c32 = arith.constant 32 : index
    %34 = vector.load %arg17[%c0_19, %c32] : memref<8x96xf32, #tpu.memory_space<vmem>>, vector<8x8xf32>
    %c0_20 = arith.constant 0 : index
    %c64 = arith.constant 64 : index
    %35 = vector.load %arg17[%c0_20, %c64] : memref<8x96xf32, #tpu.memory_space<vmem>>, vector<8x8xf32>
    %cst_21 = arith.constant 0.353553385 : f32
    %36 = vector.broadcast %cst_21 : f32 to vector<8x8xf32>
    %37 = arith.mulf %33, %36 : vector<8x8xf32>
    %38 = arith.truncf %37 : vector<8x8xf32> to vector<8x8xbf16>
    %39 = arith.truncf %34 : vector<8x8xf32> to vector<8x8xbf16>
    %cst_22 = arith.constant dense<0.000000e+00> : vector<8x8xf32>
    %40 = tpu.matmul %38, %39, %cst_22 {dimension_numbers = #tpu.dot_dimension_numbers<[1], [1], [0], [0], [0, 0, 1, 0], [], []>} : vector<8x8xbf16>, vector<8x8xbf16>, vector<8x8xf32> -> vector<8x8xf32>
    %cst_23 = arith.constant dense<0xFF800000> : vector<8xf32>
    %41 = vector.multi_reduction <maximumf>, %40, %cst_23 [1] : vector<8x8xf32> to vector<8xf32>
    %42 = vector.shape_cast %41 : vector<8xf32> to vector<8x1xf32>
    %43 = vector.broadcast %42 : vector<8x1xf32> to vector<8x8xf32>
    %44 = arith.subf %40, %43 : vector<8x8xf32>
    %45 = math.exp %44 : vector<8x8xf32>
    %cst_24 = arith.constant dense<0.000000e+00> : vector<8xf32>
    %46 = vector.multi_reduction <add>, %45, %cst_24 [1] : vector<8x8xf32> to vector<8xf32>
    %47 = vector.shape_cast %46 : vector<8xf32> to vector<8x1xf32>
    %48 = tpu.reciprocal %47 {approx = true} : vector<8x1xf32> -> vector<8x1xf32>
    %49 = vector.broadcast %48 : vector<8x1xf32> to vector<8x8xf32>
    %50 = arith.mulf %45, %49 : vector<8x8xf32>
    %51 = arith.truncf %50 : vector<8x8xf32> to vector<8x8xbf16>
    %52 = arith.truncf %35 : vector<8x8xf32> to vector<8x8xbf16>
    %cst_25 = arith.constant dense<0.000000e+00> : vector<8x8xf32>
    %53 = tpu.matmul %51, %52, %cst_25 {dimension_numbers = #tpu.dot_dimension_numbers<[1], [0], [0], [1], [0, 0, 1, 1], [], []>} : vector<8x8xbf16>, vector<8x8xbf16>, vector<8x8xf32> -> vector<8x8xf32>
    %c0_26 = arith.constant 0 : index
    %c0_27 = arith.constant 0 : index
    %54 = vector.load %arg18[%c0_26, %c0_27] : memref<8x32xf32, #tpu.memory_space<vmem>>, vector<8x8xf32>
    tpu.vector_store %arg18[%c0_26, %c0_27], %53 {strides = array<i32>} : memref<8x32xf32, #tpu.memory_space<vmem>>, vector<8x8xf32>,
    %c0_28 = arith.constant 0 : index
    %c8 = arith.constant 8 : index
    %55 = vector.load %arg17[%c0_28, %c8] : memref<8x96xf32, #tpu.memory_space<vmem>>, vector<8x8xf32>
    %c0_29 = arith.constant 0 : index
    %c40 = arith.constant 40 : index
    %56 = vector.load %arg17[%c0_29, %c40] : memref<8x96xf32, #tpu.memory_space<vmem>>, vector<8x8xf32>
    %c0_30 = arith.constant 0 : index
    %c72 = arith.constant 72 : index
    %57 = vector.load %arg17[%c0_30, %c72] : memref<8x96xf32, #tpu.memory_space<vmem>>, vector<8x8xf32>
    %cst_31 = arith.constant 0.353553385 : f32
    %58 = vector.broadcast %cst_31 : f32 to vector<8x8xf32>
    %59 = arith.mulf %55, %58 : vector<8x8xf32>
    %60 = arith.truncf %59 : vector<8x8xf32> to vector<8x8xbf16>
    %61 = arith.truncf %56 : vector<8x8xf32> to vector<8x8xbf16>
    %cst_32 = arith.constant dense<0.000000e+00> : vector<8x8xf32>
    %62 = tpu.matmul %60, %61, %cst_32 {dimension_numbers = #tpu.dot_dimension_numbers<[1], [1], [0], [0], [0, 0, 1, 0], [], []>} : vector<8x8xbf16>, vector<8x8xbf16>, vector<8x8xf32> -> vector<8x8xf32>
    %cst_33 = arith.constant dense<0xFF800000> : vector<8xf32>
    %63 = vector.multi_reduction <maximumf>, %62, %cst_33 [1] : vector<8x8xf32> to vector<8xf32>
    %64 = vector.shape_cast %63 : vector<8xf32> to vector<8x1xf32>
    %65 = vector.broadcast %64 : vector<8x1xf32> to vector<8x8xf32>
    %66 = arith.subf %62, %65 : vector<8x8xf32>
    %67 = math.exp %66 : vector<8x8xf32>
    %cst_34 = arith.constant dense<0.000000e+00> : vector<8xf32>
    %68 = vector.multi_reduction <add>, %67, %cst_34 [1] : vector<8x8xf32> to vector<8xf32>
    %69 = vector.shape_cast %68 : vector<8xf32> to vector<8x1xf32>
    %70 = tpu.reciprocal %69 {approx = true} : vector<8x1xf32> -> vector<8x1xf32>
    %71 = vector.broadcast %70 : vector<8x1xf32> to vector<8x8xf32>
    %72 = arith.mulf %67, %71 : vector<8x8xf32>
    %73 = arith.truncf %72 : vector<8x8xf32> to vector<8x8xbf16>
    %74 = arith.truncf %57 : vector<8x8xf32> to vector<8x8xbf16>
    %cst_35 = arith.constant dense<0.000000e+00> : vector<8x8xf32>
    %75 = tpu.matmul %73, %74, %cst_35 {dimension_numbers = #tpu.dot_dimension_numbers<[1], [0], [0], [1], [0, 0, 1, 1], [], []>} : vector<8x8xbf16>, vector<8x8xbf16>, vector<8x8xf32> -> vector<8x8xf32>
    %c0_36 = arith.constant 0 : index
    %c8_37 = arith.constant 8 : index
    %76 = vector.load %arg18[%c0_36, %c8_37] : memref<8x32xf32, #tpu.memory_space<vmem>>, vector<8x8xf32>
    tpu.vector_store %arg18[%c0_36, %c8_37], %75 {strides = array<i32>} : memref<8x32xf32, #tpu.memory_space<vmem>>, vector<8x8xf32>,
    %c0_38 = arith.constant 0 : index
    %c16 = arith.constant 16 : index
    %77 = vector.load %arg17[%c0_38, %c16] : memref<8x96xf32, #tpu.memory_space<vmem>>, vector<8x8xf32>
    %c0_39 = arith.constant 0 : index
    %c48 = arith.constant 48 : index
    %78 = vector.load %arg17[%c0_39, %c48] : memref<8x96xf32, #tpu.memory_space<vmem>>, vector<8x8xf32>
    %c0_40 = arith.constant 0 : index
    %c80 = arith.constant 80 : index
    %79 = vector.load %arg17[%c0_40, %c80] : memref<8x96xf32, #tpu.memory_space<vmem>>, vector<8x8xf32>
    %cst_41 = arith.constant 0.353553385 : f32
    %80 = vector.broadcast %cst_41 : f32 to vector<8x8xf32>
    %81 = arith.mulf %77, %80 : vector<8x8xf32>
    %82 = arith.truncf %81 : vector<8x8xf32> to vector<8x8xbf16>
    %83 = arith.truncf %78 : vector<8x8xf32> to vector<8x8xbf16>
    %cst_42 = arith.constant dense<0.000000e+00> : vector<8x8xf32>
    %84 = tpu.matmul %82, %83, %cst_42 {dimension_numbers = #tpu.dot_dimension_numbers<[1], [1], [0], [0], [0, 0, 1, 0], [], []>} : vector<8x8xbf16>, vector<8x8xbf16>, vector<8x8xf32> -> vector<8x8xf32>
    %cst_43 = arith.constant dense<0xFF800000> : vector<8xf32>
    %85 = vector.multi_reduction <maximumf>, %84, %cst_43 [1] : vector<8x8xf32> to vector<8xf32>
    %86 = vector.shape_cast %85 : vector<8xf32> to vector<8x1xf32>
    %87 = vector.broadcast %86 : vector<8x1xf32> to vector<8x8xf32>
    %88 = arith.subf %84, %87 : vector<8x8xf32>
    %89 = math.exp %88 : vector<8x8xf32>
    %cst_44 = arith.constant dense<0.000000e+00> : vector<8xf32>
    %90 = vector.multi_reduction <add>, %89, %cst_44 [1] : vector<8x8xf32> to vector<8xf32>
    %91 = vector.shape_cast %90 : vector<8xf32> to vector<8x1xf32>
    %92 = tpu.reciprocal %91 {approx = true} : vector<8x1xf32> -> vector<8x1xf32>
    %93 = vector.broadcast %92 : vector<8x1xf32> to vector<8x8xf32>
    %94 = arith.mulf %89, %93 : vector<8x8xf32>
    %95 = arith.truncf %94 : vector<8x8xf32> to vector<8x8xbf16>
    %96 = arith.truncf %79 : vector<8x8xf32> to vector<8x8xbf16>
    %cst_45 = arith.constant dense<0.000000e+00> : vector<8x8xf32>
    %97 = tpu.matmul %95, %96, %cst_45 {dimension_numbers = #tpu.dot_dimension_numbers<[1], [0], [0], [1], [0, 0, 1, 1], [], []>} : vector<8x8xbf16>, vector<8x8xbf16>, vector<8x8xf32> -> vector<8x8xf32>
    %c0_46 = arith.constant 0 : index
    %c16_47 = arith.constant 16 : index
    %98 = vector.load %arg18[%c0_46, %c16_47] : memref<8x32xf32, #tpu.memory_space<vmem>>, vector<8x8xf32>
    tpu.vector_store %arg18[%c0_46, %c16_47], %97 {strides = array<i32>} : memref<8x32xf32, #tpu.memory_space<vmem>>, vector<8x8xf32>,
    %c0_48 = arith.constant 0 : index
    %c24 = arith.constant 24 : index
    %99 = vector.load %arg17[%c0_48, %c24] : memref<8x96xf32, #tpu.memory_space<vmem>>, vector<8x8xf32>
    %c0_49 = arith.constant 0 : index
    %c56 = arith.constant 56 : index
    %100 = vector.load %arg17[%c0_49, %c56] : memref<8x96xf32, #tpu.memory_space<vmem>>, vector<8x8xf32>
    %c0_50 = arith.constant 0 : index
    %c88 = arith.constant 88 : index
    %101 = vector.load %arg17[%c0_50, %c88] : memref<8x96xf32, #tpu.memory_space<vmem>>, vector<8x8xf32>
    %cst_51 = arith.constant 0.353553385 : f32
    %102 = vector.broadcast %cst_51 : f32 to vector<8x8xf32>
    %103 = arith.mulf %99, %102 : vector<8x8xf32>
    %104 = arith.truncf %103 : vector<8x8xf32> to vector<8x8xbf16>
    %105 = arith.truncf %100 : vector<8x8xf32> to vector<8x8xbf16>
    %cst_52 = arith.constant dense<0.000000e+00> : vector<8x8xf32>
    %106 = tpu.matmul %104, %105, %cst_52 {dimension_numbers = #tpu.dot_dimension_numbers<[1], [1], [0], [0], [0, 0, 1, 0], [], []>} : vector<8x8xbf16>, vector<8x8xbf16>, vector<8x8xf32> -> vector<8x8xf32>
    %cst_53 = arith.constant dense<0xFF800000> : vector<8xf32>
    %107 = vector.multi_reduction <maximumf>, %106, %cst_53 [1] : vector<8x8xf32> to vector<8xf32>
    %108 = vector.shape_cast %107 : vector<8xf32> to vector<8x1xf32>
    %109 = vector.broadcast %108 : vector<8x1xf32> to vector<8x8xf32>
    %110 = arith.subf %106, %109 : vector<8x8xf32>
    %111 = math.exp %110 : vector<8x8xf32>
    %cst_54 = arith.constant dense<0.000000e+00> : vector<8xf32>
    %112 = vector.multi_reduction <add>, %111, %cst_54 [1] : vector<8x8xf32> to vector<8xf32>
    %113 = vector.shape_cast %112 : vector<8xf32> to vector<8x1xf32>
    %114 = tpu.reciprocal %113 {approx = true} : vector<8x1xf32> -> vector<8x1xf32>
    %115 = vector.broadcast %114 : vector<8x1xf32> to vector<8x8xf32>
    %116 = arith.mulf %111, %115 : vector<8x8xf32>
    %117 = arith.truncf %116 : vector<8x8xf32> to vector<8x8xbf16>
    %118 = arith.truncf %101 : vector<8x8xf32> to vector<8x8xbf16>
    %cst_55 = arith.constant dense<0.000000e+00> : vector<8x8xf32>
    %119 = tpu.matmul %117, %118, %cst_55 {dimension_numbers = #tpu.dot_dimension_numbers<[1], [0], [0], [1], [0, 0, 1, 1], [], []>} : vector<8x8xbf16>, vector<8x8xbf16>, vector<8x8xf32> -> vector<8x8xf32>
    %c0_56 = arith.constant 0 : index
    %c24_57 = arith.constant 24 : index
    %120 = vector.load %arg18[%c0_56, %c24_57] : memref<8x32xf32, #tpu.memory_space<vmem>>, vector<8x8xf32>
    tpu.vector_store %arg18[%c0_56, %c24_57], %119 {strides = array<i32>} : memref<8x32xf32, #tpu.memory_space<vmem>>, vector<8x8xf32>,
    %c0_58 = arith.constant 0 : index
    %c0_59 = arith.constant 0 : index
    %121 = vector.load %arg18[%c0_58, %c0_59] : memref<8x32xf32, #tpu.memory_space<vmem>>, vector<8x32xf32>
    %c0_60 = arith.constant 0 : index
    %c0_61 = arith.constant 0 : index
    %122 = vector.load %arg6[%c0_60, %c0_61] : memref<32x32xbf16, #tpu.memory_space<vmem>>, vector<32x32xbf16>
    %123 = arith.truncf %121 : vector<8x32xf32> to vector<8x32xbf16>
    %cst_62 = arith.constant dense<0.000000e+00> : vector<8x32xf32>
    %124 = tpu.matmul %123, %122, %cst_62 {dimension_numbers = #tpu.dot_dimension_numbers<[1], [1], [0], [0], [0, 0, 1, 0], [], []>} : vector<8x32xbf16>, vector<32x32xbf16>, vector<8x32xf32> -> vector<8x32xf32>
    %125 = arith.addf %1, %124 : vector<8x32xf32>
    %c0_63 = arith.constant 0 : index
    %c0_64 = arith.constant 0 : index
    %126 = vector.load %arg7[%c0_63, %c0_64] : memref<1x32xf32, #tpu.memory_space<vmem>>, vector<1x32xf32>
    %127 = vector.broadcast %126 : vector<1x32xf32> to vector<8x32xf32>
    %128 = arith.addf %125, %127 : vector<8x32xf32>
    %c0_65 = arith.constant 0 : index
    %c0_66 = arith.constant 0 : index
    %129 = vector.load %arg8[%c0_65, %c0_66] : memref<1x32xf32, #tpu.memory_space<vmem>>, vector<1x32xf32>
    %c0_67 = arith.constant 0 : index
    %c0_68 = arith.constant 0 : index
    %130 = vector.load %arg9[%c0_67, %c0_68] : memref<1x32xf32, #tpu.memory_space<vmem>>, vector<1x32xf32>
    %cst_69 = arith.constant dense<0.000000e+00> : vector<8xf32>
    %131 = vector.multi_reduction <add>, %128, %cst_69 [1] : vector<8x32xf32> to vector<8xf32>
    %132 = vector.shape_cast %131 : vector<8xf32> to vector<8x1xf32>
    %cst_70 = arith.constant 3.200000e+01 : f32
    %133 = vector.broadcast %cst_70 : f32 to vector<8x1xf32>
    %134 = arith.divf %132, %133 : vector<8x1xf32>
    %135 = vector.broadcast %134 : vector<8x1xf32> to vector<8x32xf32>
    %136 = arith.subf %128, %135 : vector<8x32xf32>
    %137 = arith.mulf %136, %136 : vector<8x32xf32>
    %cst_71 = arith.constant dense<0.000000e+00> : vector<8xf32>
    %138 = vector.multi_reduction <add>, %137, %cst_71 [1] : vector<8x32xf32> to vector<8xf32>
    %139 = vector.shape_cast %138 : vector<8xf32> to vector<8x1xf32>
    %cst_72 = arith.constant 3.200000e+01 : f32
    %140 = vector.broadcast %cst_72 : f32 to vector<8x1xf32>
    %141 = arith.divf %139, %140 : vector<8x1xf32>
    %142 = vector.broadcast %134 : vector<8x1xf32> to vector<8x32xf32>
    %143 = arith.subf %128, %142 : vector<8x32xf32>
    %cst_73 = arith.constant 9.99999974E-6 : f32
    %144 = vector.broadcast %cst_73 : f32 to vector<8x1xf32>
    %145 = arith.addf %141, %144 : vector<8x1xf32>
    %146 = math.rsqrt %145 : vector<8x1xf32>
    %147 = vector.broadcast %146 : vector<8x1xf32> to vector<8x32xf32>
    %148 = arith.mulf %143, %147 : vector<8x32xf32>
    %149 = vector.broadcast %129 : vector<1x32xf32> to vector<8x32xf32>
    %150 = arith.mulf %148, %149 : vector<8x32xf32>
    %151 = vector.broadcast %130 : vector<1x32xf32> to vector<8x32xf32>
    %152 = arith.addf %150, %151 : vector<8x32xf32>
    %c0_74 = arith.constant 0 : index
    %c0_75 = arith.constant 0 : index
    %153 = vector.load %arg10[%c0_74, %c0_75] : memref<64x32xbf16, #tpu.memory_space<vmem>>, vector<64x32xbf16>
    %154 = arith.truncf %152 : vector<8x32xf32> to vector<8x32xbf16>
    %cst_76 = arith.constant dense<0.000000e+00> : vector<8x64xf32>
    %155 = tpu.matmul %154, %153, %cst_76 {dimension_numbers = #tpu.dot_dimension_numbers<[1], [1], [0], [0], [0, 0, 1, 0], [], []>} : vector<8x32xbf16>, vector<64x32xbf16>, vector<8x64xf32> -> vector<8x64xf32>
    %c0_77 = arith.constant 0 : index
    %c0_78 = arith.constant 0 : index
    %156 = vector.load %arg11[%c0_77, %c0_78] : memref<1x64xf32, #tpu.memory_space<vmem>>, vector<1x64xf32>
    %157 = vector.broadcast %156 : vector<1x64xf32> to vector<8x64xf32>
    %158 = arith.addf %155, %157 : vector<8x64xf32>
    %c0_79 = arith.constant 0 : index
    %c0_80 = arith.constant 0 : index
    %159 = vector.load %arg12[%c0_79, %c0_80] : memref<64x32xbf16, #tpu.memory_space<vmem>>, vector<64x32xbf16>
    %160 = arith.truncf %152 : vector<8x32xf32> to vector<8x32xbf16>
    %cst_81 = arith.constant dense<0.000000e+00> : vector<8x64xf32>
    %161 = tpu.matmul %160, %159, %cst_81 {dimension_numbers = #tpu.dot_dimension_numbers<[1], [1], [0], [0], [0, 0, 1, 0], [], []>} : vector<8x32xbf16>, vector<64x32xbf16>, vector<8x64xf32> -> vector<8x64xf32>
    %c0_82 = arith.constant 0 : index
    %c0_83 = arith.constant 0 : index
    %162 = vector.load %arg13[%c0_82, %c0_83] : memref<1x64xf32, #tpu.memory_space<vmem>>, vector<1x64xf32>
    %163 = vector.broadcast %162 : vector<1x64xf32> to vector<8x64xf32>
    %164 = arith.addf %161, %163 : vector<8x64xf32>
    %165 = arith.negf %158 : vector<8x64xf32>
    %166 = math.exp %165 : vector<8x64xf32>
    %cst_84 = arith.constant 1.000000e+00 : f32
    %167 = vector.broadcast %cst_84 : f32 to vector<8x64xf32>
    %168 = arith.addf %167, %166 : vector<8x64xf32>
    %169 = arith.divf %167, %168 : vector<8x64xf32>
    %170 = arith.mulf %158, %169 : vector<8x64xf32>
    %171 = arith.mulf %170, %164 : vector<8x64xf32>
    %c0_85 = arith.constant 0 : index
    %c0_86 = arith.constant 0 : index
    %172 = vector.load %arg14[%c0_85, %c0_86] : memref<32x64xbf16, #tpu.memory_space<vmem>>, vector<32x64xbf16>
    %173 = arith.truncf %171 : vector<8x64xf32> to vector<8x64xbf16>
    %cst_87 = arith.constant dense<0.000000e+00> : vector<8x32xf32>
    %174 = tpu.matmul %173, %172, %cst_87 {dimension_numbers = #tpu.dot_dimension_numbers<[1], [1], [0], [0], [0, 0, 1, 0], [], []>} : vector<8x64xbf16>, vector<32x64xbf16>, vector<8x32xf32> -> vector<8x32xf32>
    %175 = arith.addf %128, %174 : vector<8x32xf32>
    %c0_88 = arith.constant 0 : index
    %c0_89 = arith.constant 0 : index
    %176 = vector.load %arg15[%c0_88, %c0_89] : memref<1x32xf32, #tpu.memory_space<vmem>>, vector<1x32xf32>
    %177 = vector.broadcast %176 : vector<1x32xf32> to vector<8x32xf32>
    %178 = arith.addf %175, %177 : vector<8x32xf32>
    %c0_90 = arith.constant 0 : index
    %c0_91 = arith.constant 0 : index
    %c0_92 = arith.constant 0 : index
    %179 = vector.load %arg16[%c0_90, %c0_91, %c0_92] : memref<1x8x32xf32, #tpu.memory_space<vmem>>, vector<1x8x32xf32>
    %180 = vector.shape_cast %179 : vector<1x8x32xf32> to vector<8x32xf32>
    %181 = vector.shape_cast %178 : vector<8x32xf32> to vector<1x8x32xf32>
    tpu.vector_store %arg16[%c0_90, %c0_91, %c0_92], %181 {strides = array<i32>} : memref<1x8x32xf32, #tpu.memory_space<vmem>>, vector<1x8x32xf32>,
    return
  }
  func.func @transform_0(%arg0: i32) -> (i32, i32, i32) {
    %c0_i32 = arith.constant 0 : i32
    %c0_i32_0 = arith.constant 0 : i32
    %c0_i32_1 = arith.constant 0 : i32
    return %arg0, %c0_i32, %c0_i32_0 : i32, i32, i32
  }
  func.func @transform_1(%arg0: i32) -> (i32, i32) {
    %c0_i32 = arith.constant 0 : i32
    %c0_i32_0 = arith.constant 0 : i32
    %c0_i32_1 = arith.constant 0 : i32
    return %c0_i32, %c0_i32_0 : i32, i32
  }
  func.func @transform_2(%arg0: i32) -> (i32, i32) {
    %c0_i32 = arith.constant 0 : i32
    %c0_i32_0 = arith.constant 0 : i32
    %c0_i32_1 = arith.constant 0 : i32
    return %c0_i32, %c0_i32_0 : i32, i32
  }
  func.func @transform_3(%arg0: i32) -> (i32, i32) {
    %c0_i32 = arith.constant 0 : i32
    %c0_i32_0 = arith.constant 0 : i32
    %c0_i32_1 = arith.constant 0 : i32
    return %c0_i32, %c0_i32_0 : i32, i32
  }
  func.func @transform_4(%arg0: i32) -> (i32, i32) {
    %c0_i32 = arith.constant 0 : i32
    %c0_i32_0 = arith.constant 0 : i32
    %c0_i32_1 = arith.constant 0 : i32
    return %c0_i32, %c0_i32_0 : i32, i32
  }
  func.func @transform_5(%arg0: i32) -> (i32, i32) {
    %c0_i32 = arith.constant 0 : i32
    %c0_i32_0 = arith.constant 0 : i32
    %c0_i32_1 = arith.constant 0 : i32
    return %c0_i32, %c0_i32_0 : i32, i32
  }
  func.func @transform_6(%arg0: i32) -> (i32, i32) {
    %c0_i32 = arith.constant 0 : i32
    %c0_i32_0 = arith.constant 0 : i32
    %c0_i32_1 = arith.constant 0 : i32
    return %c0_i32, %c0_i32_0 : i32, i32
  }
  func.func @transform_7(%arg0: i32) -> (i32, i32) {
    %c0_i32 = arith.constant 0 : i32
    %c0_i32_0 = arith.constant 0 : i32
    %c0_i32_1 = arith.constant 0 : i32
    return %c0_i32, %c0_i32_0 : i32, i32
  }
  func.func @transform_8(%arg0: i32) -> (i32, i32) {
    %c0_i32 = arith.constant 0 : i32
    %c0_i32_0 = arith.constant 0 : i32
    %c0_i32_1 = arith.constant 0 : i32
    return %c0_i32, %c0_i32_0 : i32, i32
  }
  func.func @transform_9(%arg0: i32) -> (i32, i32) {
    %c0_i32 = arith.constant 0 : i32
    %c0_i32_0 = arith.constant 0 : i32
    %c0_i32_1 = arith.constant 0 : i32
    return %c0_i32, %c0_i32_0 : i32, i32
  }
  func.func @transform_10(%arg0: i32) -> (i32, i32) {
    %c0_i32 = arith.constant 0 : i32
    %c0_i32_0 = arith.constant 0 : i32
    %c0_i32_1 = arith.constant 0 : i32
    return %c0_i32, %c0_i32_0 : i32, i32
  }
  func.func @transform_11(%arg0: i32) -> (i32, i32) {
    %c0_i32 = arith.constant 0 : i32
    %c0_i32_0 = arith.constant 0 : i32
    %c0_i32_1 = arith.constant 0 : i32
    return %c0_i32, %c0_i32_0 : i32, i32
  }
  func.func @transform_12(%arg0: i32) -> (i32, i32) {
    %c0_i32 = arith.constant 0 : i32
    %c0_i32_0 = arith.constant 0 : i32
    %c0_i32_1 = arith.constant 0 : i32
    return %c0_i32, %c0_i32_0 : i32, i32
  }
  func.func @transform_13(%arg0: i32) -> (i32, i32) {
    %c0_i32 = arith.constant 0 : i32
    %c0_i32_0 = arith.constant 0 : i32
    %c0_i32_1 = arith.constant 0 : i32
    return %c0_i32, %c0_i32_0 : i32, i32
  }
  func.func @transform_14(%arg0: i32) -> (i32, i32) {
    %c0_i32 = arith.constant 0 : i32
    %c0_i32_0 = arith.constant 0 : i32
    %c0_i32_1 = arith.constant 0 : i32
    return %c0_i32, %c0_i32_0 : i32, i32
  }
  func.func @transform_15(%arg0: i32) -> (i32, i32, i32) {
    %c0_i32 = arith.constant 0 : i32
    %c0_i32_0 = arith.constant 0 : i32
    %c0_i32_1 = arith.constant 0 : i32
    return %arg0, %c0_i32, %c0_i32_0 : i32, i32, i32
  }
}

</mosaic_0001>

<llo_original>
// kernel: tpu_custom_call.1
$region0: #{tpu_custom_call.1}
  #allocation0 [shape = 'u32[]', space=smem, size = 0x4, offset = 0x4, fixed_abs, tag = 'smem constant byte address 0x4 - core index']
  #allocation1 [shape = 'u32[144,128]{1,0:T(1,128)}', space=vmem, size = 0x12000, scoped, tag = 'internal scratch']
  #allocation2 [shape = 'f32[8,96]{1,0:T(8,128)}', space=vmem, size = 0x1000, scoped, tag = 'scratch operand']
  #allocation3 [shape = 'f32[8,32]{1,0:T(8,128)}', space=vmem, size = 0x1000, scoped, tag = 'scratch operand']
  %s0 = inlined_call_operand.vmem [shape: f32[2,8,32], index: 0, kind: input, shape index: {}]
  %s1 = inlined_call_operand.vmem [shape: f32[1,32], index: 1, kind: input, shape index: {}]
  %s2 = inlined_call_operand.vmem [shape: f32[1,32], index: 2, kind: input, shape index: {}]
  %s3 = inlined_call_operand.vmem [shape: bf16[96,32], index: 3, kind: input, shape index: {}]
  %s4 = inlined_call_operand.vmem [shape: f32[1,96], index: 4, kind: input, shape index: {}]
  %s5 = inlined_call_operand.vmem [shape: bf16[32,32], index: 5, kind: input, shape index: {}]
  %s6 = inlined_call_operand.vmem [shape: f32[1,32], index: 6, kind: input, shape index: {}]
  %s7 = inlined_call_operand.vmem [shape: f32[1,32], index: 7, kind: input, shape index: {}]
  %s8 = inlined_call_operand.vmem [shape: f32[1,32], index: 8, kind: input, shape index: {}]
  %s9 = inlined_call_operand.vmem [shape: bf16[64,32], index: 9, kind: input, shape index: {}]
  %s10 = inlined_call_operand.vmem [shape: f32[1,64], index: 10, kind: input, shape index: {}]
  %s11 = inlined_call_operand.vmem [shape: bf16[64,32], index: 11, kind: input, shape index: {}]
  %s12 = inlined_call_operand.vmem [shape: f32[1,64], index: 12, kind: input, shape index: {}]
  %s13 = inlined_call_operand.vmem [shape: bf16[32,64], index: 13, kind: input, shape index: {}]
  %s14 = inlined_call_operand.vmem [shape: f32[1,32], index: 14, kind: input, shape index: {}]
  %s15 = inlined_call_operand.hbm [shape: f32[2,8,32], index: 15, kind: output, shape index: {}]
  %s16 = sld [smem:[#allocation0]]
  $region93: #{tpu_custom_call.1} parent=0
    _
  %s18 = ssub.s32 1, %s16
  %s19 = scalar_select 0, %s18, %s16
  $region1: #{tpu_custom_call.1} parent=0
    #allocation4 [shape = 'u8[8192]{0}', space=vmem, size = 0x2000, scoped, tag = 'output window, operand 0']
    #allocation5 [shape = 's32[2]{0}', space=sflag, size = 0x8, scoped, tag = 'scoped memory for tpu_custom_call.1']
    %20 = vsyncpa [#allocation5], 0
    %s21 = scalar_lea.sflag [#allocation5], 1
    %22 = vsyncpa %s21, 0
    loop: start=0, step=1, limit=4
    $region2: #{tpu_custom_call.1} parent=1 // loop_pre_header
      _
    $region3: #{tpu_custom_call.1} parent=1 // loop_header
      %s24 = sphi 0, %s28
      %p25 = scmp.ge.s32.totalorder %s24, 4
      %s34 = sphi 0, %s36
      %s37 = sphi 0, %s34
      %s38 = sphi 0, %s37
      %s54 = sphi 0, %s38
      %s58 = sphi 0, %s58
      %s60 = sphi 0, %s58
      %s61 = sphi 0, %s60
      %s75 = sphi 0, %s61
      %s79 = sphi 0, %s79
      %s81 = sphi 0, %s79
      %s82 = sphi 0, %s81
      %s96 = sphi 0, %s82
      %s100 = sphi 0, %s100
      %s102 = sphi 0, %s100
      %s103 = sphi 0, %s102
      %s117 = sphi 0, %s103
      %s121 = sphi 0, %s121
      %s123 = sphi 0, %s121
      %s124 = sphi 0, %s123
      %s138 = sphi 0, %s124
      %s142 = sphi 0, %s142
      %s144 = sphi 0, %s142
      %s145 = sphi 0, %s144
      %s159 = sphi 0, %s145
      %s163 = sphi 0, %s163
      %s165 = sphi 0, %s163
      %s166 = sphi 0, %s165
      %s180 = sphi 0, %s166
      %s184 = sphi 0, %s184
      %s186 = sphi 0, %s184
      %s187 = sphi 0, %s186
      %s201 = sphi 0, %s187
      %s205 = sphi 0, %s205
      %s207 = sphi 0, %s205
      %s208 = sphi 0, %s207
      %s222 = sphi 0, %s208
      %s226 = sphi 0, %s226
      %s228 = sphi 0, %s226
      %s229 = sphi 0, %s228
      %s243 = sphi 0, %s229
      %s247 = sphi 0, %s247
      %s249 = sphi 0, %s247
      %s250 = sphi 0, %s249
      %s264 = sphi 0, %s250
      %s268 = sphi 0, %s268
      %s270 = sphi 0, %s268
      %s271 = sphi 0, %s270
      %s285 = sphi 0, %s271
      %s289 = sphi 0, %s289
      %s291 = sphi 0, %s289
      %s292 = sphi 0, %s291
      %s306 = sphi 0, %s292
      %s310 = sphi 0, %s310
      %s312 = sphi 0, %s310
      %s313 = sphi 0, %s312
      %s327 = sphi 0, %s313
      %s331 = sphi 0, %s331
      %s333 = sphi 0, %s331
      %s334 = sphi 0, %s333
      %s348 = sphi 0, %s334
      %s354 = sphi 0, %s356
      %s357 = sphi 0, %s354
      %s358 = sphi 0, %s357
      %s374 = sphi 0, %s358
    $region4: #{tpu_custom_call.1} parent=1 // loop_header_branch
      %27 = sbr.rel (%p25) target = $region8
    $region5: #{tpu_custom_call.1} parent=1 // loop_body
      %s29 = ssub.s32 %s24, 1
      %s30 = ssub.s32 %s24, 2
      %s31 = sadd.s32 %s24, 1
      %s32 = ssub.s32 %s24, %s31
      %p33 = scmp.eq.s32.totalorder %s32, 0
      %s35 = sadd.s32 %s34, 1
      %s36 = scalar_select %p33, %s34, %s35
      %p39 = pneg %p33
      %p40 = scmp.eq.s32.totalorder %s24, 1
      %p41 = por %p39, %p40
      %p42 = scmp.ne.s32.totalorder %s34, %s37
      %p43 = scmp.eq.s32.totalorder %s24, 0
      %p44 = por %p42, %p43
      %p45 = scmp.ne.s32.totalorder %s34, %s37
      %p46 = scmp.eq.s32.totalorder %s29, 1
      %p47 = por %p45, %p46
      %p48 = scmp.ne.s32.totalorder %s37, %s38
      %p49 = scmp.eq.s32.totalorder %s29, 0
      %p50 = por %p48, %p49
      %p51 = scmp.ne.s32.totalorder %s37, %s38
      %p52 = scmp.eq.s32.totalorder %s30, 1
      %p53 = por %p51, %p52
      %p55 = scmp.ne.s32.totalorder %s38, %s54
      %p56 = scmp.eq.s32.totalorder %s30, 0
      %p57 = por %p55, %p56
      %s59 = sadd.s32 %s58, 1
      %p62 = scmp.eq.s32.totalorder %s24, 1
      %p63 = scmp.ne.s32.totalorder %s58, %s60
      %p64 = scmp.eq.s32.totalorder %s24, 0
      %p65 = por %p63, %p64
      %p66 = scmp.ne.s32.totalorder %s58, %s60
      %p67 = scmp.eq.s32.totalorder %s29, 1
      %p68 = por %p66, %p67
      %p69 = scmp.ne.s32.totalorder %s60, %s61
      %p70 = scmp.eq.s32.totalorder %s29, 0
      %p71 = por %p69, %p70
      %p72 = scmp.ne.s32.totalorder %s60, %s61
      %p73 = scmp.eq.s32.totalorder %s30, 1
      %p74 = por %p72, %p73
      %p76 = scmp.ne.s32.totalorder %s61, %s75
      %p77 = scmp.eq.s32.totalorder %s30, 0
      %p78 = por %p76, %p77
      %s80 = sadd.s32 %s79, 1
      %p83 = scmp.eq.s32.totalorder %s24, 1
      %p84 = scmp.ne.s32.totalorder %s79, %s81
      %p85 = scmp.eq.s32.totalorder %s24, 0
      %p86 = por %p84, %p85
      %p87 = scmp.ne.s32.totalorder %s79, %s81
      %p88 = scmp.eq.s32.totalorder %s29, 1
      %p89 = por %p87, %p88
      %p90 = scmp.ne.s32.totalorder %s81, %s82
      %p91 = scmp.eq.s32.totalorder %s29, 0
      %p92 = por %p90, %p91
      %p93 = scmp.ne.s32.totalorder %s81, %s82
      %p94 = scmp.eq.s32.totalorder %s30, 1
      %p95 = por %p93, %p94
      %p97 = scmp.ne.s32.totalorder %s82, %s96
      %p98 = scmp.eq.s32.totalorder %s30, 0
      %p99 = por %p97, %p98
      %s101 = sadd.s32 %s100, 1
      %p104 = scmp.eq.s32.totalorder %s24, 1
      %p105 = scmp.ne.s32.totalorder %s100, %s102
      %p106 = scmp.eq.s32.totalorder %s24, 0
      %p107 = por %p105, %p106
      %p108 = scmp.ne.s32.totalorder %s100, %s102
      %p109 = scmp.eq.s32.totalorder %s29, 1
      %p110 = por %p108, %p109
      %p111 = scmp.ne.s32.totalorder %s102, %s103
      %p112 = scmp.eq.s32.totalorder %s29, 0
      %p113 = por %p111, %p112
      %p114 = scmp.ne.s32.totalorder %s102, %s103
      %p115 = scmp.eq.s32.totalorder %s30, 1
      %p116 = por %p114, %p115
      %p118 = scmp.ne.s32.totalorder %s103, %s117
      %p119 = scmp.eq.s32.totalorder %s30, 0
      %p120 = por %p118, %p119
      %s122 = sadd.s32 %s121, 1
      %p125 = scmp.eq.s32.totalorder %s24, 1
      %p126 = scmp.ne.s32.totalorder %s121, %s123
      %p127 = scmp.eq.s32.totalorder %s24, 0
      %p128 = por %p126, %p127
      %p129 = scmp.ne.s32.totalorder %s121, %s123
      %p130 = scmp.eq.s32.totalorder %s29, 1
      %p131 = por %p129, %p130
      %p132 = scmp.ne.s32.totalorder %s123, %s124
      %p133 = scmp.eq.s32.totalorder %s29, 0
      %p134 = por %p132, %p133
      %p135 = scmp.ne.s32.totalorder %s123, %s124
      %p136 = scmp.eq.s32.totalorder %s30, 1
      %p137 = por %p135, %p136
      %p139 = scmp.ne.s32.totalorder %s124, %s138
      %p140 = scmp.eq.s32.totalorder %s30, 0
      %p141 = por %p139, %p140
      %s143 = sadd.s32 %s142, 1
      %p146 = scmp.eq.s32.totalorder %s24, 1
      %p147 = scmp.ne.s32.totalorder %s142, %s144
      %p148 = scmp.eq.s32.totalorder %s24, 0
      %p149 = por %p147, %p148
      %p150 = scmp.ne.s32.totalorder %s142, %s144
      %p151 = scmp.eq.s32.totalorder %s29, 1
      %p152 = por %p150, %p151
      %p153 = scmp.ne.s32.totalorder %s144, %s145
      %p154 = scmp.eq.s32.totalorder %s29, 0
      %p155 = por %p153, %p154
      %p156 = scmp.ne.s32.totalorder %s144, %s145
      %p157 = scmp.eq.s32.totalorder %s30, 1
      %p158 = por %p156, %p157
      %p160 = scmp.ne.s32.totalorder %s145, %s159
      %p161 = scmp.eq.s32.totalorder %s30, 0
      %p162 = por %p160, %p161
      %s164 = sadd.s32 %s163, 1
      %p167 = scmp.eq.s32.totalorder %s24, 1
      %p168 = scmp.ne.s32.totalorder %s163, %s165
      %p169 = scmp.eq.s32.totalorder %s24, 0
      %p170 = por %p168, %p169
      %p171 = scmp.ne.s32.totalorder %s163, %s165
      %p172 = scmp.eq.s32.totalorder %s29, 1
      %p173 = por %p171, %p172
      %p174 = scmp.ne.s32.totalorder %s165, %s166
      %p175 = scmp.eq.s32.totalorder %s29, 0
      %p176 = por %p174, %p175
      %p177 = scmp.ne.s32.totalorder %s165, %s166
      %p178 = scmp.eq.s32.totalorder %s30, 1
      %p179 = por %p177, %p178
      %p181 = scmp.ne.s32.totalorder %s166, %s180
      %p182 = scmp.eq.s32.totalorder %s30, 0
      %p183 = por %p181, %p182
      %s185 = sadd.s32 %s184, 1
      %p188 = scmp.eq.s32.totalorder %s24, 1
      %p189 = scmp.ne.s32.totalorder %s184, %s186
      %p190 = scmp.eq.s32.totalorder %s24, 0
      %p191 = por %p189, %p190
      %p192 = scmp.ne.s32.totalorder %s184, %s186
      %p193 = scmp.eq.s32.totalorder %s29, 1
      %p194 = por %p192, %p193
      %p195 = scmp.ne.s32.totalorder %s186, %s187
      %p196 = scmp.eq.s32.totalorder %s29, 0
      %p197 = por %p195, %p196
      %p198 = scmp.ne.s32.totalorder %s186, %s187
      %p199 = scmp.eq.s32.totalorder %s30, 1
      %p200 = por %p198, %p199
      %p202 = scmp.ne.s32.totalorder %s187, %s201
      %p203 = scmp.eq.s32.totalorder %s30, 0
      %p204 = por %p202, %p203
      %s206 = sadd.s32 %s205, 1
      %p209 = scmp.eq.s32.totalorder %s24, 1
      %p210 = scmp.ne.s32.totalorder %s205, %s207
      %p211 = scmp.eq.s32.totalorder %s24, 0
      %p212 = por %p210, %p211
      %p213 = scmp.ne.s32.totalorder %s205, %s207
      %p214 = scmp.eq.s32.totalorder %s29, 1
      %p215 = por %p213, %p214
      %p216 = scmp.ne.s32.totalorder %s207, %s208
      %p217 = scmp.eq.s32.totalorder %s29, 0
      %p218 = por %p216, %p217
      %p219 = scmp.ne.s32.totalorder %s207, %s208
      %p220 = scmp.eq.s32.totalorder %s30, 1
      %p221 = por %p219, %p220
      %p223 = scmp.ne.s32.totalorder %s208, %s222
      %p224 = scmp.eq.s32.totalorder %s30, 0
      %p225 = por %p223, %p224
      %s227 = sadd.s32 %s226, 1
      %p230 = scmp.eq.s32.totalorder %s24, 1
      %p231 = scmp.ne.s32.totalorder %s226, %s228
      %p232 = scmp.eq.s32.totalorder %s24, 0
      %p233 = por %p231, %p232
      %p234 = scmp.ne.s32.totalorder %s226, %s228
      %p235 = scmp.eq.s32.totalorder %s29, 1
      %p236 = por %p234, %p235
      %p237 = scmp.ne.s32.totalorder %s228, %s229
      %p238 = scmp.eq.s32.totalorder %s29, 0
      %p239 = por %p237, %p238
      %p240 = scmp.ne.s32.totalorder %s228, %s229
      %p241 = scmp.eq.s32.totalorder %s30, 1
      %p242 = por %p240, %p241
      %p244 = scmp.ne.s32.totalorder %s229, %s243
      %p245 = scmp.eq.s32.totalorder %s30, 0
      %p246 = por %p244, %p245
      %s248 = sadd.s32 %s247, 1
      %p251 = scmp.eq.s32.totalorder %s24, 1
      %p252 = scmp.ne.s32.totalorder %s247, %s249
      %p253 = scmp.eq.s32.totalorder %s24, 0
      %p254 = por %p252, %p253
      %p255 = scmp.ne.s32.totalorder %s247, %s249
      %p256 = scmp.eq.s32.totalorder %s29, 1
      %p257 = por %p255, %p256
      %p258 = scmp.ne.s32.totalorder %s249, %s250
      %p259 = scmp.eq.s32.totalorder %s29, 0
      %p260 = por %p258, %p259
      %p261 = scmp.ne.s32.totalorder %s249, %s250
      %p262 = scmp.eq.s32.totalorder %s30, 1
      %p263 = por %p261, %p262
      %p265 = scmp.ne.s32.totalorder %s250, %s264
      %p266 = scmp.eq.s32.totalorder %s30, 0
      %p267 = por %p265, %p266
      %s269 = sadd.s32 %s268, 1
      %p272 = scmp.eq.s32.totalorder %s24, 1
      %p273 = scmp.ne.s32.totalorder %s268, %s270
      %p274 = scmp.eq.s32.totalorder %s24, 0
      %p275 = por %p273, %p274
      %p276 = scmp.ne.s32.totalorder %s268, %s270
      %p277 = scmp.eq.s32.totalorder %s29, 1
      %p278 = por %p276, %p277
      %p279 = scmp.ne.s32.totalorder %s270, %s271
      %p280 = scmp.eq.s32.totalorder %s29, 0
      %p281 = por %p279, %p280
      %p282 = scmp.ne.s32.totalorder %s270, %s271
      %p283 = scmp.eq.s32.totalorder %s30, 1
      %p284 = por %p282, %p283
      %p286 = scmp.ne.s32.totalorder %s271, %s285
      %p287 = scmp.eq.s32.totalorder %s30, 0
      %p288 = por %p286, %p287
      %s290 = sadd.s32 %s289, 1
      %p293 = scmp.eq.s32.totalorder %s24, 1
      %p294 = scmp.ne.s32.totalorder %s289, %s291
      %p295 = scmp.eq.s32.totalorder %s24, 0
      %p296 = por %p294, %p295
      %p297 = scmp.ne.s32.totalorder %s289, %s291
      %p298 = scmp.eq.s32.totalorder %s29, 1
      %p299 = por %p297, %p298
      %p300 = scmp.ne.s32.totalorder %s291, %s292
      %p301 = scmp.eq.s32.totalorder %s29, 0
      %p302 = por %p300, %p301
      %p303 = scmp.ne.s32.totalorder %s291, %s292
      %p304 = scmp.eq.s32.totalorder %s30, 1
      %p305 = por %p303, %p304
      %p307 = scmp.ne.s32.totalorder %s292, %s306
      %p308 = scmp.eq.s32.totalorder %s30, 0
      %p309 = por %p307, %p308
      %s311 = sadd.s32 %s310, 1
      %p314 = scmp.eq.s32.totalorder %s24, 1
      %p315 = scmp.ne.s32.totalorder %s310, %s312
      %p316 = scmp.eq.s32.totalorder %s24, 0
      %p317 = por %p315, %p316
      %p318 = scmp.ne.s32.totalorder %s310, %s312
      %p319 = scmp.eq.s32.totalorder %s29, 1
      %p320 = por %p318, %p319
      %p321 = scmp.ne.s32.totalorder %s312, %s313
      %p322 = scmp.eq.s32.totalorder %s29, 0
      %p323 = por %p321, %p322
      %p324 = scmp.ne.s32.totalorder %s312, %s313
      %p325 = scmp.eq.s32.totalorder %s30, 1
      %p326 = por %p324, %p325
      %p328 = scmp.ne.s32.totalorder %s313, %s327
      %p329 = scmp.eq.s32.totalorder %s30, 0
      %p330 = por %p328, %p329
      %s332 = sadd.s32 %s331, 1
      %p335 = scmp.eq.s32.totalorder %s24, 1
      %p336 = scmp.ne.s32.totalorder %s331, %s333
      %p337 = scmp.eq.s32.totalorder %s24, 0
      %p338 = por %p336, %p337
      %p339 = scmp.ne.s32.totalorder %s331, %s333
      %p340 = scmp.eq.s32.totalorder %s29, 1
      %p341 = por %p339, %p340
      %p342 = scmp.ne.s32.totalorder %s333, %s334
      %p343 = scmp.eq.s32.totalorder %s29, 0
      %p344 = por %p342, %p343
      %p345 = scmp.ne.s32.totalorder %s333, %s334
      %p346 = scmp.eq.s32.totalorder %s30, 1
      %p347 = por %p345, %p346
      %p349 = scmp.ne.s32.totalorder %s334, %s348
      %p350 = scmp.eq.s32.totalorder %s30, 0
      %p351 = por %p349, %p350
      %s352 = ssub.s32 %s24, %s31
      %p353 = scmp.eq.s32.totalorder %s352, 0
      %s355 = sadd.s32 %s354, 1
      %s356 = scalar_select %p353, %s354, %s355
      %p359 = pneg %p353
      %p360 = scmp.eq.s32.totalorder %s24, 1
      %p361 = por %p359, %p360
      %p362 = scmp.ne.s32.totalorder %s354, %s357
      %p363 = scmp.eq.s32.totalorder %s24, 0
      %p364 = por %p362, %p363
      %p365 = scmp.ne.s32.totalorder %s354, %s357
      %p366 = scmp.eq.s32.totalorder %s29, 1
      %p367 = por %p365, %p366
      %p368 = scmp.ne.s32.totalorder %s357, %s358
      %p369 = scmp.eq.s32.totalorder %s29, 0
      %p370 = por %p368, %p369
      %p371 = scmp.ne.s32.totalorder %s357, %s358
      %p372 = scmp.eq.s32.totalorder %s30, 1
      %p373 = por %p371, %p372
      %p375 = scmp.ne.s32.totalorder %s358, %s374
      %p376 = scmp.eq.s32.totalorder %s30, 0
      %p377 = por %p375, %p376
      %p378 = scmp.le.s32.totalorder 1, %s24
      %p379 = scmp.lt.s32.totalorder %s24, 3
      %p380 = pnand %p378, %p379
      %p381 = pneg %p380
      // Predicated region
      $region9: #{tpu_custom_call.1} parent=5 // pred_check
        _
      $region10: #{tpu_custom_call.1} parent=5 // pred_check_branch
        %383 = sbr.rel (%p380) target = $region12
      $region11: #{tpu_custom_call.1} parent=5 // pred_region
        %s384 = ssub.s32 %s24, 1
        // Predicated region
        $region13: #{tpu_custom_call.1} parent=11 // pred_check
          %p385 = pneg %p71
        $region14: #{tpu_custom_call.1} parent=11 // pred_check_branch
          %387 = sbr.rel (%p385) target = $region16
        $region15: #{tpu_custom_call.1} parent=11 // pred_region
          _
        $region16: #{tpu_custom_call.1} parent=11 // pred_fallthru
          _
        // Predicated region
        $region17: #{tpu_custom_call.1} parent=11 // pred_check
          %p388 = pneg %p92
        $region18: #{tpu_custom_call.1} parent=11 // pred_check_branch
          %390 = sbr.rel (%p388) target = $region20
        $region19: #{tpu_custom_call.1} parent=11 // pred_region
          _
        $region20: #{tpu_custom_call.1} parent=11 // pred_fallthru
          _
        // Predicated region
        $region21: #{tpu_custom_call.1} parent=11 // pred_check
          %p391 = pneg %p113
        $region22: #{tpu_custom_call.1} parent=11 // pred_check_branch
          %393 = sbr.rel (%p391) target = $region24
        $region23: #{tpu_custom_call.1} parent=11 // pred_region
          _
        $region24: #{tpu_custom_call.1} parent=11 // pred_fallthru
          _
        // Predicated region
        $region25: #{tpu_custom_call.1} parent=11 // pred_check
          %p394 = pneg %p134
        $region26: #{tpu_custom_call.1} parent=11 // pred_check_branch
          %396 = sbr.rel (%p394) target = $region28
        $region27: #{tpu_custom_call.1} parent=11 // pred_region
          _
        $region28: #{tpu_custom_call.1} parent=11 // pred_fallthru
          _
        // Predicated region
        $region29: #{tpu_custom_call.1} parent=11 // pred_check
          %p397 = pneg %p155
        $region30: #{tpu_custom_call.1} parent=11 // pred_check_branch
          %399 = sbr.rel (%p397) target = $region32
        $region31: #{tpu_custom_call.1} parent=11 // pred_region
          _
        $region32: #{tpu_custom_call.1} parent=11 // pred_fallthru
          _
        // Predicated region
        $region33: #{tpu_custom_call.1} parent=11 // pred_check
          %p400 = pneg %p176
        $region34: #{tpu_custom_call.1} parent=11 // pred_check_branch
          %402 = sbr.rel (%p400) target = $region36
        $region35: #{tpu_custom_call.1} parent=11 // pred_region
          _
        $region36: #{tpu_custom_call.1} parent=11 // pred_fallthru
          _
        // Predicated region
        $region37: #{tpu_custom_call.1} parent=11 // pred_check
          %p403 = pneg %p197
        $region38: #{tpu_custom_call.1} parent=11 // pred_check_branch
          %405 = sbr.rel (%p403) target = $region40
        $region39: #{tpu_custom_call.1} parent=11 // pred_region
          _
        $region40: #{tpu_custom_call.1} parent=11 // pred_fallthru
          _
        // Predicated region
        $region41: #{tpu_custom_call.1} parent=11 // pred_check
          %p406 = pneg %p218
        $region42: #{tpu_custom_call.1} parent=11 // pred_check_branch
          %408 = sbr.rel (%p406) target = $region44
        $region43: #{tpu_custom_call.1} parent=11 // pred_region
          _
        $region44: #{tpu_custom_call.1} parent=11 // pred_fallthru
          _
        // Predicated region
        $region45: #{tpu_custom_call.1} parent=11 // pred_check
          %p409 = pneg %p239
        $region46: #{tpu_custom_call.1} parent=11 // pred_check_branch
          %411 = sbr.rel (%p409) target = $region48
        $region47: #{tpu_custom_call.1} parent=11 // pred_region
          _
        $region48: #{tpu_custom_call.1} parent=11 // pred_fallthru
          _
        // Predicated region
        $region49: #{tpu_custom_call.1} parent=11 // pred_check
          %p412 = pneg %p260
        $region50: #{tpu_custom_call.1} parent=11 // pred_check_branch
          %414 = sbr.rel (%p412) target = $region52
        $region51: #{tpu_custom_call.1} parent=11 // pred_region
          _
        $region52: #{tpu_custom_call.1} parent=11 // pred_fallthru
          _
        // Predicated region
        $region53: #{tpu_custom_call.1} parent=11 // pred_check
          %p415 = pneg %p281
        $region54: #{tpu_custom_call.1} parent=11 // pred_check_branch
          %417 = sbr.rel (%p415) target = $region56
        $region55: #{tpu_custom_call.1} parent=11 // pred_region
          _
        $region56: #{tpu_custom_call.1} parent=11 // pred_fallthru
          _
        // Predicated region
        $region57: #{tpu_custom_call.1} parent=11 // pred_check
          %p418 = pneg %p302
        $region58: #{tpu_custom_call.1} parent=11 // pred_check_branch
          %420 = sbr.rel (%p418) target = $region60
        $region59: #{tpu_custom_call.1} parent=11 // pred_region
          _
        $region60: #{tpu_custom_call.1} parent=11 // pred_fallthru
          _
        // Predicated region
        $region61: #{tpu_custom_call.1} parent=11 // pred_check
          %p421 = pneg %p323
        $region62: #{tpu_custom_call.1} parent=11 // pred_check_branch
          %423 = sbr.rel (%p421) target = $region64
        $region63: #{tpu_custom_call.1} parent=11 // pred_region
          _
        $region64: #{tpu_custom_call.1} parent=11 // pred_fallthru
          _
        // Predicated region
        $region65: #{tpu_custom_call.1} parent=11 // pred_check
          %p424 = pneg %p344
        $region66: #{tpu_custom_call.1} parent=11 // pred_check_branch
          %426 = sbr.rel (%p424) target = $region68
        $region67: #{tpu_custom_call.1} parent=11 // pred_region
          _
        $region68: #{tpu_custom_call.1} parent=11 // pred_fallthru
          _
      $region12: #{tpu_custom_call.1} parent=5 // pred_fallthru
        _
      %p427 = scmp.lt.s32.totalorder %s24, 2
      // Predicated region
      $region69: #{tpu_custom_call.1} parent=5 // pred_check
        %p428 = pneg %p427
      $region70: #{tpu_custom_call.1} parent=5 // pred_check_branch
        %430 = sbr.rel (%p428) target = $region72
      $region71: #{tpu_custom_call.1} parent=5 // pred_region
        // Predicated region
        $region73: #{tpu_custom_call.1} parent=71 // pred_check
          %p431 = pneg %p44
        $region74: #{tpu_custom_call.1} parent=71 // pred_check_branch
          %433 = sbr.rel (%p431) target = $region76
        $region75: #{tpu_custom_call.1} parent=71 // pred_region
          %p434 = scmp.lt.s32.totalorder %s24, 1
          %s435 = scalar_select %p434, %s24, 1
          %s436 = smul.addr %s435, 8
          %s437 = scalar_lea.vmem %s0, %s436
        $region76: #{tpu_custom_call.1} parent=71 // pred_fallthru
          _
      $region72: #{tpu_custom_call.1} parent=5 // pred_fallthru
        _
      %p438 = scmp.le.s32.totalorder 1, %s24
      %p439 = scmp.lt.s32.totalorder %s24, 3
      %p440 = pnand %p438, %p439
      %p441 = pneg %p440
      // Predicated region
      $region77: #{tpu_custom_call.1} parent=5 // pred_check
        _
      $region78: #{tpu_custom_call.1} parent=5 // pred_check_branch
        %443 = sbr.rel (%p440) target = $region80
      $region79: #{tpu_custom_call.1} parent=5 // pred_region
        %s444 = ssub.s32 %s24, 1
        %p445 = scmp.lt.s32.totalorder %s29, 1
        %s446 = scalar_select %p445, %s29, 1
        %s447 = smul.addr %s446, 8
        %s448 = scalar_lea.vmem %s0, %s447
        %p449 = pneg %p50
        %p450 = pneg %p47
        %p451 = pneg %p71
        %p452 = pneg %p68
        %p453 = pneg %p92
        %p454 = pneg %p89
        %p455 = pneg %p113
        %p456 = pneg %p110
        %p457 = pneg %p134
        %p458 = pneg %p131
        %p459 = pneg %p155
        %p460 = pneg %p152
        %p461 = pneg %p176
        %p462 = pneg %p173
        %p463 = pneg %p197
        %p464 = pneg %p194
        %p465 = pneg %p218
        %p466 = pneg %p215
        %p467 = pneg %p239
        %p468 = pneg %p236
        %p469 = pneg %p260
        %p470 = pneg %p257
        %p471 = pneg %p281
        %p472 = pneg %p278
        %p473 = pneg %p302
        %p474 = pneg %p299
        %p475 = pneg %p323
        %p476 = pneg %p320
        %p477 = pneg %p344
        %p478 = pneg %p341
        %p479 = pneg %p370
        %p480 = pneg %p367
        %s481 = sand.u32 %s357, 1
        %s482 = scalar_lea.sflag [#allocation5], %s481
        %s483 = sand.u32 %s357, 1
        %s484 = smul.addr %s483, 8
        %s485 = scalar_lea.vmem [#allocation4], %s484
        %p486 = scmp.lt.s32.totalorder %s29, 1
        %s487 = scalar_select %p486, %s29, 1
        %s488 = smul.addr %s487, 8
        %s489 = scalar_lea.vmem %s0, %s488
        %v491 = vld [vmem:[%s489] sm:$0xff]
        %v492 = vld [vmem:[%s1] sm:$0x1]
        %v493 = vld [vmem:[%s2] sm:$0x1]
        %vm494 = vcmask 261120
        %v495 = vsel %vm494, %v491, 0.0
        %496 = vadd.xlane.f32.xlu0 %v495
        %v497 = vpop.xlane.xlu0 %496
        %v498 = vrcp.pop 32.0
        %v499 = vmul.f32 %v497, %v498
        %v500 = vsub.f32 %v491, %v499
        %v501 = vmul.f32 %v500, %v500
        %v502 = vsel %vm494, %v501, 0.0
        %503 = vadd.xlane.f32.xlu0 %v502
        %v504 = vpop.xlane.xlu0 %503
        %v505 = vmul.f32 %v504, %v498
        %v506 = vadd.f32 %v505, 1e-05
        %v507 = vrsqrt.pop %v506
        %v508 = vmul.f32 %v500, %v507
        %v510 = vlaneseq
        %v511 = vshrl.u32 %v510, 7
        %v512 = vsub.s32 0, %v511
        %v513 = vrot.slane %v492, %v512
        %v515 = vmul.f32 %v508, %v513
        %v517 = vlaneseq
        %v518 = vshrl.u32 %v517, 7
        %v519 = vsub.s32 0, %v518
        %v520 = vrot.slane %v493, %v519
        %v522 = vadd.f32 %v515, %v520
        %v523 = vld [vmem:[%s3] sm:$0xf]
        %v524 = vld [vmem:[%s3 + $0x4] sm:$0xf]
        %v525 = vld [vmem:[%s3 + $0x8] sm:$0xf]
        %v526 = vld [vmem:[%s3 + $0xc] sm:$0xf]
        %v527 = vld [vmem:[%s3 + $0x10] sm:$0xf]
        %v528 = vld [vmem:[%s3 + $0x14] sm:$0xf]
        %v529 = vld [vmem:[%s3 + $0x18] sm:$0xf]
        %v530 = vld [vmem:[%s3 + $0x1c] sm:$0xf]
        %v531 = vld [vmem:[%s3 + $0x20] sm:$0xf]
        %v532 = vld [vmem:[%s3 + $0x24] sm:$0xf]
        %v533 = vld [vmem:[%s3 + $0x28] sm:$0xf]
        %v534 = vld [vmem:[%s3 + $0x2c] sm:$0xf]
        %v535 = vpack.c.bf16 %v522, %v522
        %v536 = vld [vmem:[%s4] sm:$0x1]
        %v538 = vlaneseq
        %v539 = vshrl.u32 %v538, 7
        %v540 = vsub.s32 0, %v539
        %v541 = vrot.slane %v536, %v540
        %v555 = vunpack.c.l.b16 %v523
        %v556 = vunpack.c.l.b16 %v524
        %v557 = vunpack.c.l.b16 %v525
        %v558 = vunpack.c.l.b16 %v526
        %v559 = vunpack.c.l.b16 %v527
        %v560 = vunpack.c.l.b16 %v528
        %v561 = vunpack.c.l.b16 %v529
        %v562 = vunpack.c.l.b16 %v530
        %v563 = vunpack.c.l.b16 %v531
        %v564 = vunpack.c.l.b16 %v532
        %v565 = vunpack.c.l.b16 %v533
        %v566 = vunpack.c.l.b16 %v534
        %v567 = vpack.c.b16 %v556, %v555
        %v568 = vpack.c.b16 %v558, %v557
        %v569 = vpack.c.b16 %v560, %v559
        %v570 = vpack.c.b16 %v562, %v561
        %v571 = vpack.c.b16 %v564, %v563
        %v572 = vpack.c.b16 %v566, %v565
        %v574 = vsel %vm494, %v535, 0
        %v577 = vsel %vm494, %v567, 0
        %v580 = vsel %vm494, %v568, 0
        %v583 = vsel %vm494, %v569, 0
        %v586 = vsel %vm494, %v570, 0
        %v589 = vsel %vm494, %v571, 0
        %v592 = vsel %vm494, %v572, 0
        %594 = vmatprep.subr.bf16.mxu0 0
        %595 = vmatpush1.bf16.xpose.msra.mxu0 %v577
        %596 = vmatprep.subr.bf16.mxu0 0
        %597 = vmatpush1.bf16.xpose.msra.mxu0 %v580
        %598 = vmatprep.subr.bf16.mxu0 0
        %599 = vmatpush1.bf16.xpose.msra.mxu0 %v583
        %600 = vmatprep.subr.bf16.mxu0 0
        %601 = vmatpush1.bf16.xpose.msra.mxu0 %v586
        %602 = vmatprep.subr.bf16.mxu0 0
        %603 = vmatpush1.bf16.xpose.msra.mxu0 %v589
        %604 = vmatprep.subr.bf16.mxu0 0
        %605 = vmatpush1.bf16.xpose.msra.mxu0 %v592
        %606 = vmatprep.subr.bf16.mxu0 0
        %607 = vmatpush1.bf16.xpose.msra.mxu0 0
        %608 = vmatprep.subr.bf16.mxu0 0
        %609 = vmatpush1.bf16.xpose.msra.mxu0 0
        %610 = vmatprep.subr.bf16.mxu0 0
        %611 = vmatpush1.bf16.xpose.msra.mxu0 0
        %612 = vmatprep.subr.bf16.mxu0 0
        %613 = vmatpush1.bf16.xpose.msra.mxu0 0
        %614 = vmatprep.subr.bf16.mxu0 0
        %615 = vmatpush1.bf16.xpose.msra.mxu0 0
        %616 = vmatprep.subr.bf16.mxu0 0
        %617 = vmatpush1.bf16.xpose.msra.mxu0 0
        %618 = vmatprep.subr.bf16.mxu0 0
        %619 = vmatpush1.bf16.xpose.msra.mxu0 0
        %620 = vmatprep.subr.bf16.mxu0 0
        %621 = vmatpush1.bf16.xpose.msra.mxu0 0
        %622 = vmatprep.subr.bf16.mxu0 0
        %623 = vmatpush1.bf16.xpose.msra.mxu0 0
        %624 = vmatprep.subr.bf16.mxu0 0
        %625 = vmatpush1.bf16.xpose.msra.mxu0 0
        %626 = vmatprep.mubr.bf16.mxu0 0
        %627 = vmatmul.mubr.bf16.gmra.mrb[0].mxu0 %v574
        %v628 = vpop.f32.mrb[0].mxu0
        %v629 = vadd.f32 %v541, %v628
        %v630 = vpop.f32.mrb[0].mxu0
        %v631 = vpop.f32.mrb[0].mxu0
        %v632 = vpop.f32.mrb[0].mxu0
        %633 = vdwg.mxu0
        %vm634 = vcmask 785408
        %635 = vst.msk [vmem:[#allocation2] sm:$0xff] %vm634, %v629
        %v636 = vld [vmem:[#allocation2] sm:$0xff]
        %v637 = vmul.f32 %v636, 0.35355338
        %v638 = vpack.c.bf16 %v637, %v637
        %v639 = vpack.c.bf16 %v636, %v636
        %641 = vrot.lane.b32.xlu0 %v639, 96
        %v642 = vpop.permute.xlu0 %641
        %vm643 = vcmask 64512
        %v645 = vsel %vm643, %v638, 0
        %v648 = vsel %vm643, %v642, 0
        %650 = vmatprep.subr.bf16.mxu0 0
        %651 = vmatpush1.bf16.xpose.msra.mxu0 %v648
        %652 = vmatprep.subr.bf16.mxu0 0
        %653 = vmatpush1.bf16.xpose.msra.mxu0 0
        %654 = vmatprep.subr.bf16.mxu0 0
        %655 = vmatpush1.bf16.xpose.msra.mxu0 0
        %656 = vmatprep.subr.bf16.mxu0 0
        %657 = vmatpush1.bf16.xpose.msra.mxu0 0
        %658 = vmatprep.subr.bf16.mxu0 0
        %659 = vmatpush1.bf16.xpose.msra.mxu0 0
        %660 = vmatprep.subr.bf16.mxu0 0
        %661 = vmatpush1.bf16.xpose.msra.mxu0 0
        %662 = vmatprep.subr.bf16.mxu0 0
        %663 = vmatpush1.bf16.xpose.msra.mxu0 0
        %664 = vmatprep.subr.bf16.mxu0 0
        %665 = vmatpush1.bf16.xpose.msra.mxu0 0
        %666 = vmatprep.subr.bf16.mxu0 0
        %667 = vmatpush1.bf16.xpose.msra.mxu0 0
        %668 = vmatprep.subr.bf16.mxu0 0
        %669 = vmatpush1.bf16.xpose.msra.mxu0 0
        %670 = vmatprep.subr.bf16.mxu0 0
        %671 = vmatpush1.bf16.xpose.msra.mxu0 0
        %672 = vmatprep.subr.bf16.mxu0 0
        %673 = vmatpush1.bf16.xpose.msra.mxu0 0
        %674 = vmatprep.subr.bf16.mxu0 0
        %675 = vmatpush1.bf16.xpose.msra.mxu0 0
        %676 = vmatprep.subr.bf16.mxu0 0
        %677 = vmatpush1.bf16.xpose.msra.mxu0 0
        %678 = vmatprep.subr.bf16.mxu0 0
        %679 = vmatpush1.bf16.xpose.msra.mxu0 0
        %680 = vmatprep.subr.bf16.mxu0 0
        %681 = vmatpush1.bf16.xpose.msra.mxu0 0
        %682 = vmatprep.mubr.bf16.mxu0 0
        %683 = vmatmul.mubr.bf16.gmra.mrb[0].mxu0 %v645
        %v684 = vpop.f32.mrb[0].mxu0
        %v685 = vadd.f32 0.0, %v684
        %v686 = vpop.f32.mrb[0].mxu0
        %v687 = vpop.f32.mrb[0].mxu0
        %v688 = vpop.f32.mrb[0].mxu0
        %689 = vdwg.mxu0
        %v690 = vsel %vm643, %v685, -inf
        %691 = vmax.xlane.f32.xlu0 %v690
        %v692 = vpop.xlane.xlu0 %691
        %v693 = vsub.f32 %v685, %v692
        %v694 = vmul.f32 %v693, 1.442695
        %v695 = vpow.pop %v694
        %v696 = vsel %vm643, %v695, 0.0
        %697 = vadd.xlane.f32.xlu0 %v696
        %v698 = vpop.xlane.xlu0 %697
        %v699 = vrcp.pop %v698
        %v700 = vmul.f32 %v695, %v699
        %v701 = vpack.c.bf16 %v700, %v700
        %702 = vrot.lane.b32.xlu0 %v639, 64
        %v703 = vpop.permute.xlu0 %702
        %v705 = vsel %vm643, %v701, 0
        %vm707 = vcmask 1043456
        %v709 = vsel %vm707, %v703, 0
        %711 = vmatprep.subr.bf16.mxu0 0
        %712 = vmatpush1.bf16.msra.mxu0 %v709
        %713 = vmatprep.subr.bf16.mxu0 0
        %714 = vmatpush1.bf16.msra.mxu0 0
        %715 = vmatprep.subr.bf16.mxu0 0
        %716 = vmatpush1.bf16.msra.mxu0 0
        %717 = vmatprep.subr.bf16.mxu0 0
        %718 = vmatpush1.bf16.msra.mxu0 0
        %719 = vmatprep.subr.bf16.mxu0 0
        %720 = vmatpush1.bf16.msra.mxu0 0
        %721 = vmatprep.subr.bf16.mxu0 0
        %722 = vmatpush1.bf16.msra.mxu0 0
        %723 = vmatprep.subr.bf16.mxu0 0
        %724 = vmatpush1.bf16.msra.mxu0 0
        %725 = vmatprep.subr.bf16.mxu0 0
        %726 = vmatpush1.bf16.msra.mxu0 0
        %727 = vmatprep.subr.bf16.mxu0 0
        %728 = vmatpush1.bf16.msra.mxu0 0
        %729 = vmatprep.subr.bf16.mxu0 0
        %730 = vmatpush1.bf16.msra.mxu0 0
        %731 = vmatprep.subr.bf16.mxu0 0
        %732 = vmatpush1.bf16.msra.mxu0 0
        %733 = vmatprep.subr.bf16.mxu0 0
        %734 = vmatpush1.bf16.msra.mxu0 0
        %735 = vmatprep.subr.bf16.mxu0 0
        %736 = vmatpush1.bf16.msra.mxu0 0
        %737 = vmatprep.subr.bf16.mxu0 0
        %738 = vmatpush1.bf16.msra.mxu0 0
        %739 = vmatprep.subr.bf16.mxu0 0
        %740 = vmatpush1.bf16.msra.mxu0 0
        %741 = vmatprep.subr.bf16.mxu0 0
        %742 = vmatpush1.bf16.msra.mxu0 0
        %743 = vmatprep.mubr.bf16.mxu0 0
        %744 = vmatmul.mubr.bf16.gmra.mrb[0].mxu0 %v705
        %v745 = vpop.f32.mrb[0].mxu0
        %v746 = vadd.f32 0.0, %v745
        %v747 = vpop.f32.mrb[0].mxu0
        %v748 = vpop.f32.mrb[0].mxu0
        %v749 = vpop.f32.mrb[0].mxu0
        %750 = vdwg.mxu0
        %751 = vst.msk [vmem:[#allocation3] sm:$0xff] %vm643, %v746
        %v752 = vld [vmem:[#allocation2] sm:$0xff]
        %v753 = vmul.f32 %v752, 0.35355338
        %v754 = vpack.c.bf16 %v753, %v753
        %v755 = vpack.c.bf16 %v752, %v752
        %757 = vrot.lane.b32.xlu0 %v754, 120
        %v758 = vpop.permute.xlu0 %757
        %760 = vrot.lane.b32.xlu0 %v755, 88
        %v761 = vpop.permute.xlu0 %760
        %v763 = vsel %vm643, %v758, 0
        %v766 = vsel %vm643, %v761, 0
        %768 = vmatprep.subr.bf16.mxu0 0
        %769 = vmatpush1.bf16.xpose.msra.mxu0 %v766
        %770 = vmatprep.subr.bf16.mxu0 0
        %771 = vmatpush1.bf16.xpose.msra.mxu0 0
        %772 = vmatprep.subr.bf16.mxu0 0
        %773 = vmatpush1.bf16.xpose.msra.mxu0 0
        %774 = vmatprep.subr.bf16.mxu0 0
        %775 = vmatpush1.bf16.xpose.msra.mxu0 0
        %776 = vmatprep.subr.bf16.mxu0 0
        %777 = vmatpush1.bf16.xpose.msra.mxu0 0
        %778 = vmatprep.subr.bf16.mxu0 0
        %779 = vmatpush1.bf16.xpose.msra.mxu0 0
        %780 = vmatprep.subr.bf16.mxu0 0
        %781 = vmatpush1.bf16.xpose.msra.mxu0 0
        %782 = vmatprep.subr.bf16.mxu0 0
        %783 = vmatpush1.bf16.xpose.msra.mxu0 0
        %784 = vmatprep.subr.bf16.mxu0 0
        %785 = vmatpush1.bf16.xpose.msra.mxu0 0
        %786 = vmatprep.subr.bf16.mxu0 0
        %787 = vmatpush1.bf16.xpose.msra.mxu0 0
        %788 = vmatprep.subr.bf16.mxu0 0
        %789 = vmatpush1.bf16.xpose.msra.mxu0 0
        %790 = vmatprep.subr.bf16.mxu0 0
        %791 = vmatpush1.bf16.xpose.msra.mxu0 0
        %792 = vmatprep.subr.bf16.mxu0 0
        %793 = vmatpush1.bf16.xpose.msra.mxu0 0
        %794 = vmatprep.subr.bf16.mxu0 0
        %795 = vmatpush1.bf16.xpose.msra.mxu0 0
        %796 = vmatprep.subr.bf16.mxu0 0
        %797 = vmatpush1.bf16.xpose.msra.mxu0 0
        %798 = vmatprep.subr.bf16.mxu0 0
        %799 = vmatpush1.bf16.xpose.msra.mxu0 0
        %800 = vmatprep.mubr.bf16.mxu0 0
        %801 = vmatmul.mubr.bf16.gmra.mrb[0].mxu0 %v763
        %v802 = vpop.f32.mrb[0].mxu0
        %v803 = vadd.f32 0.0, %v802
        %v804 = vpop.f32.mrb[0].mxu0
        %v805 = vpop.f32.mrb[0].mxu0
        %v806 = vpop.f32.mrb[0].mxu0
        %807 = vdwg.mxu0
        %v808 = vsel %vm643, %v803, -inf
        %809 = vmax.xlane.f32.xlu0 %v808
        %v810 = vpop.xlane.xlu0 %809
        %v811 = vsub.f32 %v803, %v810
        %v812 = vmul.f32 %v811, 1.442695
        %v813 = vpow.pop %v812
        %v814 = vsel %vm643, %v813, 0.0
        %815 = vadd.xlane.f32.xlu0 %v814
        %v816 = vpop.xlane.xlu0 %815
        %v817 = vrcp.pop %v816
        %v818 = vmul.f32 %v813, %v817
        %v819 = vpack.c.bf16 %v818, %v818
        %820 = vrot.lane.b32.xlu0 %v755, 56
        %v821 = vpop.permute.xlu0 %820
        %v823 = vsel %vm643, %v819, 0
        %v826 = vsel %vm707, %v821, 0
        %828 = vmatprep.subr.bf16.mxu0 0
        %829 = vmatpush1.bf16.msra.mxu0 %v826
        %830 = vmatprep.subr.bf16.mxu0 0
        %831 = vmatpush1.bf16.msra.mxu0 0
        %832 = vmatprep.subr.bf16.mxu0 0
        %833 = vmatpush1.bf16.msra.mxu0 0
        %834 = vmatprep.subr.bf16.mxu0 0
        %835 = vmatpush1.bf16.msra.mxu0 0
        %836 = vmatprep.subr.bf16.mxu0 0
        %837 = vmatpush1.bf16.msra.mxu0 0
        %838 = vmatprep.subr.bf16.mxu0 0
        %839 = vmatpush1.bf16.msra.mxu0 0
        %840 = vmatprep.subr.bf16.mxu0 0
        %841 = vmatpush1.bf16.msra.mxu0 0
        %842 = vmatprep.subr.bf16.mxu0 0
        %843 = vmatpush1.bf16.msra.mxu0 0
        %844 = vmatprep.subr.bf16.mxu0 0
        %845 = vmatpush1.bf16.msra.mxu0 0
        %846 = vmatprep.subr.bf16.mxu0 0
        %847 = vmatpush1.bf16.msra.mxu0 0
        %848 = vmatprep.subr.bf16.mxu0 0
        %849 = vmatpush1.bf16.msra.mxu0 0
        %850 = vmatprep.subr.bf16.mxu0 0
        %851 = vmatpush1.bf16.msra.mxu0 0
        %852 = vmatprep.subr.bf16.mxu0 0
        %853 = vmatpush1.bf16.msra.mxu0 0
        %854 = vmatprep.subr.bf16.mxu0 0
        %855 = vmatpush1.bf16.msra.mxu0 0
        %856 = vmatprep.subr.bf16.mxu0 0
        %857 = vmatpush1.bf16.msra.mxu0 0
        %858 = vmatprep.subr.bf16.mxu0 0
        %859 = vmatpush1.bf16.msra.mxu0 0
        %860 = vmatprep.mubr.bf16.mxu0 0
        %861 = vmatmul.mubr.bf16.gmra.mrb[0].mxu0 %v823
        %v862 = vpop.f32.mrb[0].mxu0
        %v863 = vadd.f32 0.0, %v862
        %v864 = vpop.f32.mrb[0].mxu0
        %v865 = vpop.f32.mrb[0].mxu0
        %v866 = vpop.f32.mrb[0].mxu0
        %867 = vdwg.mxu0
        %869 = vrot.lane.b32.xlu0 %v863, 8
        %v870 = vpop.permute.xlu0 %869
        %vm872 = vcmask 130112
        %873 = vst.msk [vmem:[#allocation3] sm:$0xff] %vm872, %v870
        %v874 = vld [vmem:[#allocation2] sm:$0xff]
        %v875 = vmul.f32 %v874, 0.35355338
        %v876 = vpack.c.bf16 %v875, %v875
        %v877 = vpack.c.bf16 %v874, %v874
        %879 = vrot.lane.b32.xlu0 %v876, 112
        %v880 = vpop.permute.xlu0 %879
        %882 = vrot.lane.b32.xlu0 %v877, 80
        %v883 = vpop.permute.xlu0 %882
        %v885 = vsel %vm643, %v880, 0
        %v888 = vsel %vm643, %v883, 0
        %890 = vmatprep.subr.bf16.mxu0 0
        %891 = vmatpush1.bf16.xpose.msra.mxu0 %v888
        %892 = vmatprep.subr.bf16.mxu0 0
        %893 = vmatpush1.bf16.xpose.msra.mxu0 0
        %894 = vmatprep.subr.bf16.mxu0 0
        %895 = vmatpush1.bf16.xpose.msra.mxu0 0
        %896 = vmatprep.subr.bf16.mxu0 0
        %897 = vmatpush1.bf16.xpose.msra.mxu0 0
        %898 = vmatprep.subr.bf16.mxu0 0
        %899 = vmatpush1.bf16.xpose.msra.mxu0 0
        %900 = vmatprep.subr.bf16.mxu0 0
        %901 = vmatpush1.bf16.xpose.msra.mxu0 0
        %902 = vmatprep.subr.bf16.mxu0 0
        %903 = vmatpush1.bf16.xpose.msra.mxu0 0
        %904 = vmatprep.subr.bf16.mxu0 0
        %905 = vmatpush1.bf16.xpose.msra.mxu0 0
        %906 = vmatprep.subr.bf16.mxu0 0
        %907 = vmatpush1.bf16.xpose.msra.mxu0 0
        %908 = vmatprep.subr.bf16.mxu0 0
        %909 = vmatpush1.bf16.xpose.msra.mxu0 0
        %910 = vmatprep.subr.bf16.mxu0 0
        %911 = vmatpush1.bf16.xpose.msra.mxu0 0
        %912 = vmatprep.subr.bf16.mxu0 0
        %913 = vmatpush1.bf16.xpose.msra.mxu0 0
        %914 = vmatprep.subr.bf16.mxu0 0
        %915 = vmatpush1.bf16.xpose.msra.mxu0 0
        %916 = vmatprep.subr.bf16.mxu0 0
        %917 = vmatpush1.bf16.xpose.msra.mxu0 0
        %918 = vmatprep.subr.bf16.mxu0 0
        %919 = vmatpush1.bf16.xpose.msra.mxu0 0
        %920 = vmatprep.subr.bf16.mxu0 0
        %921 = vmatpush1.bf16.xpose.msra.mxu0 0
        %922 = vmatprep.mubr.bf16.mxu0 0
        %923 = vmatmul.mubr.bf16.gmra.mrb[0].mxu0 %v885
        %v924 = vpop.f32.mrb[0].mxu0
        %v925 = vadd.f32 0.0, %v924
        %v926 = vpop.f32.mrb[0].mxu0
        %v927 = vpop.f32.mrb[0].mxu0
        %v928 = vpop.f32.mrb[0].mxu0
        %929 = vdwg.mxu0
        %v930 = vsel %vm643, %v925, -inf
        %931 = vmax.xlane.f32.xlu0 %v930
        %v932 = vpop.xlane.xlu0 %931
        %v933 = vsub.f32 %v925, %v932
        %v934 = vmul.f32 %v933, 1.442695
        %v935 = vpow.pop %v934
        %v936 = vsel %vm643, %v935, 0.0
        %937 = vadd.xlane.f32.xlu0 %v936
        %v938 = vpop.xlane.xlu0 %937
        %v939 = vrcp.pop %v938
        %v940 = vmul.f32 %v935, %v939
        %v941 = vpack.c.bf16 %v940, %v940
        %942 = vrot.lane.b32.xlu0 %v877, 48
        %v943 = vpop.permute.xlu0 %942
        %v945 = vsel %vm643, %v941, 0
        %v948 = vsel %vm707, %v943, 0
        %950 = vmatprep.subr.bf16.mxu0 0
        %951 = vmatpush1.bf16.msra.mxu0 %v948
        %952 = vmatprep.subr.bf16.mxu0 0
        %953 = vmatpush1.bf16.msra.mxu0 0
        %954 = vmatprep.subr.bf16.mxu0 0
        %955 = vmatpush1.bf16.msra.mxu0 0
        %956 = vmatprep.subr.bf16.mxu0 0
        %957 = vmatpush1.bf16.msra.mxu0 0
        %958 = vmatprep.subr.bf16.mxu0 0
        %959 = vmatpush1.bf16.msra.mxu0 0
        %960 = vmatprep.subr.bf16.mxu0 0
        %961 = vmatpush1.bf16.msra.mxu0 0
        %962 = vmatprep.subr.bf16.mxu0 0
        %963 = vmatpush1.bf16.msra.mxu0 0
        %964 = vmatprep.subr.bf16.mxu0 0
        %965 = vmatpush1.bf16.msra.mxu0 0
        %966 = vmatprep.subr.bf16.mxu0 0
        %967 = vmatpush1.bf16.msra.mxu0 0
        %968 = vmatprep.subr.bf16.mxu0 0
        %969 = vmatpush1.bf16.msra.mxu0 0
        %970 = vmatprep.subr.bf16.mxu0 0
        %971 = vmatpush1.bf16.msra.mxu0 0
        %972 = vmatprep.subr.bf16.mxu0 0
        %973 = vmatpush1.bf16.msra.mxu0 0
        %974 = vmatprep.subr.bf16.mxu0 0
        %975 = vmatpush1.bf16.msra.mxu0 0
        %976 = vmatprep.subr.bf16.mxu0 0
        %977 = vmatpush1.bf16.msra.mxu0 0
        %978 = vmatprep.subr.bf16.mxu0 0
        %979 = vmatpush1.bf16.msra.mxu0 0
        %980 = vmatprep.subr.bf16.mxu0 0
        %981 = vmatpush1.bf16.msra.mxu0 0
        %982 = vmatprep.mubr.bf16.mxu0 0
        %983 = vmatmul.mubr.bf16.gmra.mrb[0].mxu0 %v945
        %v984 = vpop.f32.mrb[0].mxu0
        %v985 = vadd.f32 0.0, %v984
        %v986 = vpop.f32.mrb[0].mxu0
        %v987 = vpop.f32.mrb[0].mxu0
        %v988 = vpop.f32.mrb[0].mxu0
        %989 = vdwg.mxu0
        %991 = vrot.lane.b32.xlu0 %v985, 16
        %v992 = vpop.permute.xlu0 %991
        %vm994 = vcmask 195712
        %995 = vst.msk [vmem:[#allocation3] sm:$0xff] %vm994, %v992
        %v996 = vld [vmem:[#allocation2] sm:$0xff]
        %v997 = vmul.f32 %v996, 0.35355338
        %v998 = vpack.c.bf16 %v997, %v997
        %v999 = vpack.c.bf16 %v996, %v996
        %1001 = vrot.lane.b32.xlu0 %v998, 104
        %v1002 = vpop.permute.xlu0 %1001
        %1004 = vrot.lane.b32.xlu0 %v999, 72
        %v1005 = vpop.permute.xlu0 %1004
        %v1007 = vsel %vm643, %v1002, 0
        %v1010 = vsel %vm643, %v1005, 0
        %1012 = vmatprep.subr.bf16.mxu0 0
        %1013 = vmatpush1.bf16.xpose.msra.mxu0 %v1010
        %1014 = vmatprep.subr.bf16.mxu0 0
        %1015 = vmatpush1.bf16.xpose.msra.mxu0 0
        %1016 = vmatprep.subr.bf16.mxu0 0
        %1017 = vmatpush1.bf16.xpose.msra.mxu0 0
        %1018 = vmatprep.subr.bf16.mxu0 0
        %1019 = vmatpush1.bf16.xpose.msra.mxu0 0
        %1020 = vmatprep.subr.bf16.mxu0 0
        %1021 = vmatpush1.bf16.xpose.msra.mxu0 0
        %1022 = vmatprep.subr.bf16.mxu0 0
        %1023 = vmatpush1.bf16.xpose.msra.mxu0 0
        %1024 = vmatprep.subr.bf16.mxu0 0
        %1025 = vmatpush1.bf16.xpose.msra.mxu0 0
        %1026 = vmatprep.subr.bf16.mxu0 0
        %1027 = vmatpush1.bf16.xpose.msra.mxu0 0
        %1028 = vmatprep.subr.bf16.mxu0 0
        %1029 = vmatpush1.bf16.xpose.msra.mxu0 0
        %1030 = vmatprep.subr.bf16.mxu0 0
        %1031 = vmatpush1.bf16.xpose.msra.mxu0 0
        %1032 = vmatprep.subr.bf16.mxu0 0
        %1033 = vmatpush1.bf16.xpose.msra.mxu0 0
        %1034 = vmatprep.subr.bf16.mxu0 0
        %1035 = vmatpush1.bf16.xpose.msra.mxu0 0
        %1036 = vmatprep.subr.bf16.mxu0 0
        %1037 = vmatpush1.bf16.xpose.msra.mxu0 0
        %1038 = vmatprep.subr.bf16.mxu0 0
        %1039 = vmatpush1.bf16.xpose.msra.mxu0 0
        %1040 = vmatprep.subr.bf16.mxu0 0
        %1041 = vmatpush1.bf16.xpose.msra.mxu0 0
        %1042 = vmatprep.subr.bf16.mxu0 0
        %1043 = vmatpush1.bf16.xpose.msra.mxu0 0
        %1044 = vmatprep.mubr.bf16.mxu0 0
        %1045 = vmatmul.mubr.bf16.gmra.mrb[0].mxu0 %v1007
        %v1046 = vpop.f32.mrb[0].mxu0
        %v1047 = vadd.f32 0.0, %v1046
        %v1048 = vpop.f32.mrb[0].mxu0
        %v1049 = vpop.f32.mrb[0].mxu0
        %v1050 = vpop.f32.mrb[0].mxu0
        %1051 = vdwg.mxu0
        %v1052 = vsel %vm643, %v1047, -inf
        %1053 = vmax.xlane.f32.xlu0 %v1052
        %v1054 = vpop.xlane.xlu0 %1053
        %v1055 = vsub.f32 %v1047, %v1054
        %v1056 = vmul.f32 %v1055, 1.442695
        %v1057 = vpow.pop %v1056
        %v1058 = vsel %vm643, %v1057, 0.0
        %1059 = vadd.xlane.f32.xlu0 %v1058
        %v1060 = vpop.xlane.xlu0 %1059
        %v1061 = vrcp.pop %v1060
        %v1062 = vmul.f32 %v1057, %v1061
        %v1063 = vpack.c.bf16 %v1062, %v1062
        %1064 = vrot.lane.b32.xlu0 %v999, 40
        %v1065 = vpop.permute.xlu0 %1064
        %v1067 = vsel %vm643, %v1063, 0
        %v1070 = vsel %vm707, %v1065, 0
        %1072 = vmatprep.subr.bf16.mxu0 0
        %1073 = vmatpush1.bf16.msra.mxu0 %v1070
        %1074 = vmatprep.subr.bf16.mxu0 0
        %1075 = vmatpush1.bf16.msra.mxu0 0
        %1076 = vmatprep.subr.bf16.mxu0 0
        %1077 = vmatpush1.bf16.msra.mxu0 0
        %1078 = vmatprep.subr.bf16.mxu0 0
        %1079 = vmatpush1.bf16.msra.mxu0 0
        %1080 = vmatprep.subr.bf16.mxu0 0
        %1081 = vmatpush1.bf16.msra.mxu0 0
        %1082 = vmatprep.subr.bf16.mxu0 0
        %1083 = vmatpush1.bf16.msra.mxu0 0
        %1084 = vmatprep.subr.bf16.mxu0 0
        %1085 = vmatpush1.bf16.msra.mxu0 0
        %1086 = vmatprep.subr.bf16.mxu0 0
        %1087 = vmatpush1.bf16.msra.mxu0 0
        %1088 = vmatprep.subr.bf16.mxu0 0
        %1089 = vmatpush1.bf16.msra.mxu0 0
        %1090 = vmatprep.subr.bf16.mxu0 0
        %1091 = vmatpush1.bf16.msra.mxu0 0
        %1092 = vmatprep.subr.bf16.mxu0 0
        %1093 = vmatpush1.bf16.msra.mxu0 0
        %1094 = vmatprep.subr.bf16.mxu0 0
        %1095 = vmatpush1.bf16.msra.mxu0 0
        %1096 = vmatprep.subr.bf16.mxu0 0
        %1097 = vmatpush1.bf16.msra.mxu0 0
        %1098 = vmatprep.subr.bf16.mxu0 0
        %1099 = vmatpush1.bf16.msra.mxu0 0
        %1100 = vmatprep.subr.bf16.mxu0 0
        %1101 = vmatpush1.bf16.msra.mxu0 0
        %1102 = vmatprep.subr.bf16.mxu0 0
        %1103 = vmatpush1.bf16.msra.mxu0 0
        %1104 = vmatprep.mubr.bf16.mxu0 0
        %1105 = vmatmul.mubr.bf16.gmra.mrb[0].mxu0 %v1067
        %v1106 = vpop.f32.mrb[0].mxu0
        %v1107 = vadd.f32 0.0, %v1106
        %v1108 = vpop.f32.mrb[0].mxu0
        %v1109 = vpop.f32.mrb[0].mxu0
        %v1110 = vpop.f32.mrb[0].mxu0
        %1111 = vdwg.mxu0
        %1113 = vrot.lane.b32.xlu0 %v1107, 24
        %v1114 = vpop.permute.xlu0 %1113
        %vm1116 = vcmask 261312
        %1117 = vst.msk [vmem:[#allocation3] sm:$0xff] %vm1116, %v1114
        %v1118 = vld [vmem:[#allocation3] sm:$0xff]
        %v1119 = vld [vmem:[%s5] sm:$0xf]
        %v1120 = vld [vmem:[%s5 + $0x4] sm:$0xf]
        %v1121 = vld [vmem:[%s5 + $0x8] sm:$0xf]
        %v1122 = vld [vmem:[%s5 + $0xc] sm:$0xf]
        %v1123 = vpack.c.bf16 %v1118, %v1118
        %v1128 = vunpack.c.l.b16 %v1119
        %v1129 = vunpack.c.l.b16 %v1120
        %v1130 = vunpack.c.l.b16 %v1121
        %v1131 = vunpack.c.l.b16 %v1122
        %v1132 = vpack.c.b16 %v1129, %v1128
        %v1133 = vpack.c.b16 %v1131, %v1130
        %v1135 = vsel %vm494, %v1123, 0
        %v1138 = vsel %vm494, %v1132, 0
        %v1141 = vsel %vm494, %v1133, 0
        %1143 = vmatprep.subr.bf16.mxu0 0
        %1144 = vmatpush1.bf16.xpose.msra.mxu0 %v1138
        %1145 = vmatprep.subr.bf16.mxu0 0
        %1146 = vmatpush1.bf16.xpose.msra.mxu0 %v1141
        %1147 = vmatprep.subr.bf16.mxu0 0
        %1148 = vmatpush1.bf16.xpose.msra.mxu0 0
        %1149 = vmatprep.subr.bf16.mxu0 0
        %1150 = vmatpush1.bf16.xpose.msra.mxu0 0
        %1151 = vmatprep.subr.bf16.mxu0 0
        %1152 = vmatpush1.bf16.xpose.msra.mxu0 0
        %1153 = vmatprep.subr.bf16.mxu0 0
        %1154 = vmatpush1.bf16.xpose.msra.mxu0 0
        %1155 = vmatprep.subr.bf16.mxu0 0
        %1156 = vmatpush1.bf16.xpose.msra.mxu0 0
        %1157 = vmatprep.subr.bf16.mxu0 0
        %1158 = vmatpush1.bf16.xpose.msra.mxu0 0
        %1159 = vmatprep.subr.bf16.mxu0 0
        %1160 = vmatpush1.bf16.xpose.msra.mxu0 0
        %1161 = vmatprep.subr.bf16.mxu0 0
        %1162 = vmatpush1.bf16.xpose.msra.mxu0 0
        %1163 = vmatprep.subr.bf16.mxu0 0
        %1164 = vmatpush1.bf16.xpose.msra.mxu0 0
        %1165 = vmatprep.subr.bf16.mxu0 0
        %1166 = vmatpush1.bf16.xpose.msra.mxu0 0
        %1167 = vmatprep.subr.bf16.mxu0 0
        %1168 = vmatpush1.bf16.xpose.msra.mxu0 0
        %1169 = vmatprep.subr.bf16.mxu0 0
        %1170 = vmatpush1.bf16.xpose.msra.mxu0 0
        %1171 = vmatprep.subr.bf16.mxu0 0
        %1172 = vmatpush1.bf16.xpose.msra.mxu0 0
        %1173 = vmatprep.subr.bf16.mxu0 0
        %1174 = vmatpush1.bf16.xpose.msra.mxu0 0
        %1175 = vmatprep.mubr.bf16.mxu0 0
        %1176 = vmatmul.mubr.bf16.gmra.mrb[0].mxu0 %v1135
        %v1177 = vpop.f32.mrb[0].mxu0
        %v1178 = vadd.f32 0.0, %v1177
        %v1179 = vpop.f32.mrb[0].mxu0
        %v1180 = vpop.f32.mrb[0].mxu0
        %v1181 = vpop.f32.mrb[0].mxu0
        %1182 = vdwg.mxu0
        %v1183 = vadd.f32 %v491, %v1178
        %v1184 = vld [vmem:[%s6] sm:$0x1]
        %v1186 = vlaneseq
        %v1187 = vshrl.u32 %v1186, 7
        %v1188 = vsub.s32 0, %v1187
        %v1189 = vrot.slane %v1184, %v1188
        %v1191 = vadd.f32 %v1183, %v1189
        %v1192 = vld [vmem:[%s7] sm:$0x1]
        %v1193 = vld [vmem:[%s8] sm:$0x1]
        %v1194 = vsel %vm494, %v1191, 0.0
        %1195 = vadd.xlane.f32.xlu0 %v1194
        %v1196 = vpop.xlane.xlu0 %1195
        %v1197 = vmul.f32 %v1196, %v498
        %v1198 = vsub.f32 %v1191, %v1197
        %v1199 = vmul.f32 %v1198, %v1198
        %v1200 = vsel %vm494, %v1199, 0.0
        %1201 = vadd.xlane.f32.xlu0 %v1200
        %v1202 = vpop.xlane.xlu0 %1201
        %v1203 = vmul.f32 %v1202, %v498
        %v1204 = vadd.f32 %v1203, 1e-05
        %v1205 = vrsqrt.pop %v1204
        %v1206 = vmul.f32 %v1198, %v1205
        %v1208 = vlaneseq
        %v1209 = vshrl.u32 %v1208, 7
        %v1210 = vsub.s32 0, %v1209
        %v1211 = vrot.slane %v1192, %v1210
        %v1213 = vmul.f32 %v1206, %v1211
        %v1215 = vlaneseq
        %v1216 = vshrl.u32 %v1215, 7
        %v1217 = vsub.s32 0, %v1216
        %v1218 = vrot.slane %v1193, %v1217
        %v1220 = vadd.f32 %v1213, %v1218
        %v1221 = vld [vmem:[%s9] sm:$0xf]
        %v1222 = vld [vmem:[%s9 + $0x4] sm:$0xf]
        %v1223 = vld [vmem:[%s9 + $0x8] sm:$0xf]
        %v1224 = vld [vmem:[%s9 + $0xc] sm:$0xf]
        %v1225 = vld [vmem:[%s9 + $0x10] sm:$0xf]
        %v1226 = vld [vmem:[%s9 + $0x14] sm:$0xf]
        %v1227 = vld [vmem:[%s9 + $0x18] sm:$0xf]
        %v1228 = vld [vmem:[%s9 + $0x1c] sm:$0xf]
        %v1229 = vpack.c.bf16 %v1220, %v1220
        %v1230 = vld [vmem:[%s10] sm:$0x1]
        %v1232 = vlaneseq
        %v1233 = vshrl.u32 %v1232, 7
        %v1234 = vsub.s32 0, %v1233
        %v1235 = vrot.slane %v1230, %v1234
        %v1245 = vunpack.c.l.b16 %v1221
        %v1246 = vunpack.c.l.b16 %v1222
        %v1247 = vunpack.c.l.b16 %v1223
        %v1248 = vunpack.c.l.b16 %v1224
        %v1249 = vunpack.c.l.b16 %v1225
        %v1250 = vunpack.c.l.b16 %v1226
        %v1251 = vunpack.c.l.b16 %v1227
        %v1252 = vunpack.c.l.b16 %v1228
        %v1253 = vpack.c.b16 %v1246, %v1245
        %v1254 = vpack.c.b16 %v1248, %v1247
        %v1255 = vpack.c.b16 %v1250, %v1249
        %v1256 = vpack.c.b16 %v1252, %v1251
        %v1258 = vsel %vm494, %v1229, 0
        %v1261 = vsel %vm494, %v1253, 0
        %v1264 = vsel %vm494, %v1254, 0
        %v1267 = vsel %vm494, %v1255, 0
        %v1270 = vsel %vm494, %v1256, 0
        %1272 = vmatprep.subr.bf16.mxu0 0
        %1273 = vmatpush1.bf16.xpose.msra.mxu0 %v1261
        %1274 = vmatprep.subr.bf16.mxu0 0
        %1275 = vmatpush1.bf16.xpose.msra.mxu0 %v1264
        %1276 = vmatprep.subr.bf16.mxu0 0
        %1277 = vmatpush1.bf16.xpose.msra.mxu0 %v1267
        %1278 = vmatprep.subr.bf16.mxu0 0
        %1279 = vmatpush1.bf16.xpose.msra.mxu0 %v1270
        %1280 = vmatprep.subr.bf16.mxu0 0
        %1281 = vmatpush1.bf16.xpose.msra.mxu0 0
        %1282 = vmatprep.subr.bf16.mxu0 0
        %1283 = vmatpush1.bf16.xpose.msra.mxu0 0
        %1284 = vmatprep.subr.bf16.mxu0 0
        %1285 = vmatpush1.bf16.xpose.msra.mxu0 0
        %1286 = vmatprep.subr.bf16.mxu0 0
        %1287 = vmatpush1.bf16.xpose.msra.mxu0 0
        %1288 = vmatprep.subr.bf16.mxu0 0
        %1289 = vmatpush1.bf16.xpose.msra.mxu0 0
        %1290 = vmatprep.subr.bf16.mxu0 0
        %1291 = vmatpush1.bf16.xpose.msra.mxu0 0
        %1292 = vmatprep.subr.bf16.mxu0 0
        %1293 = vmatpush1.bf16.xpose.msra.mxu0 0
        %1294 = vmatprep.subr.bf16.mxu0 0
        %1295 = vmatpush1.bf16.xpose.msra.mxu0 0
        %1296 = vmatprep.subr.bf16.mxu0 0
        %1297 = vmatpush1.bf16.xpose.msra.mxu0 0
        %1298 = vmatprep.subr.bf16.mxu0 0
        %1299 = vmatpush1.bf16.xpose.msra.mxu0 0
        %1300 = vmatprep.subr.bf16.mxu0 0
        %1301 = vmatpush1.bf16.xpose.msra.mxu0 0
        %1302 = vmatprep.subr.bf16.mxu0 0
        %1303 = vmatpush1.bf16.xpose.msra.mxu0 0
        %1304 = vmatprep.mubr.bf16.mxu0 0
        %1305 = vmatmul.mubr.bf16.gmra.mrb[0].mxu0 %v1258
        %v1306 = vpop.f32.mrb[0].mxu0
        %v1307 = vadd.f32 %v1235, %v1306
        %v1308 = vpop.f32.mrb[0].mxu0
        %v1309 = vpop.f32.mrb[0].mxu0
        %v1310 = vpop.f32.mrb[0].mxu0
        %1311 = vdwg.mxu0
        %v1312 = vld [vmem:[%s11] sm:$0xf]
        %v1313 = vld [vmem:[%s11 + $0x4] sm:$0xf]
        %v1314 = vld [vmem:[%s11 + $0x8] sm:$0xf]
        %v1315 = vld [vmem:[%s11 + $0xc] sm:$0xf]
        %v1316 = vld [vmem:[%s11 + $0x10] sm:$0xf]
        %v1317 = vld [vmem:[%s11 + $0x14] sm:$0xf]
        %v1318 = vld [vmem:[%s11 + $0x18] sm:$0xf]
        %v1319 = vld [vmem:[%s11 + $0x1c] sm:$0xf]
        %v1320 = vld [vmem:[%s12] sm:$0x1]
        %v1322 = vlaneseq
        %v1323 = vshrl.u32 %v1322, 7
        %v1324 = vsub.s32 0, %v1323
        %v1325 = vrot.slane %v1320, %v1324
        %v1335 = vunpack.c.l.b16 %v1312
        %v1336 = vunpack.c.l.b16 %v1313
        %v1337 = vunpack.c.l.b16 %v1314
        %v1338 = vunpack.c.l.b16 %v1315
        %v1339 = vunpack.c.l.b16 %v1316
        %v1340 = vunpack.c.l.b16 %v1317
        %v1341 = vunpack.c.l.b16 %v1318
        %v1342 = vunpack.c.l.b16 %v1319
        %v1343 = vpack.c.b16 %v1336, %v1335
        %v1344 = vpack.c.b16 %v1338, %v1337
        %v1345 = vpack.c.b16 %v1340, %v1339
        %v1346 = vpack.c.b16 %v1342, %v1341
        %v1348 = vsel %vm494, %v1343, 0
        %v1351 = vsel %vm494, %v1344, 0
        %v1354 = vsel %vm494, %v1345, 0
        %v1357 = vsel %vm494, %v1346, 0
        %1359 = vmatprep.subr.bf16.mxu0 0
        %1360 = vmatpush1.bf16.xpose.msra.mxu0 %v1348
        %1361 = vmatprep.subr.bf16.mxu0 0
        %1362 = vmatpush1.bf16.xpose.msra.mxu0 %v1351
        %1363 = vmatprep.subr.bf16.mxu0 0
        %1364 = vmatpush1.bf16.xpose.msra.mxu0 %v1354
        %1365 = vmatprep.subr.bf16.mxu0 0
        %1366 = vmatpush1.bf16.xpose.msra.mxu0 %v1357
        %1367 = vmatprep.subr.bf16.mxu0 0
        %1368 = vmatpush1.bf16.xpose.msra.mxu0 0
        %1369 = vmatprep.subr.bf16.mxu0 0
        %1370 = vmatpush1.bf16.xpose.msra.mxu0 0
        %1371 = vmatprep.subr.bf16.mxu0 0
        %1372 = vmatpush1.bf16.xpose.msra.mxu0 0
        %1373 = vmatprep.subr.bf16.mxu0 0
        %1374 = vmatpush1.bf16.xpose.msra.mxu0 0
        %1375 = vmatprep.subr.bf16.mxu0 0
        %1376 = vmatpush1.bf16.xpose.msra.mxu0 0
        %1377 = vmatprep.subr.bf16.mxu0 0
        %1378 = vmatpush1.bf16.xpose.msra.mxu0 0
        %1379 = vmatprep.subr.bf16.mxu0 0
        %1380 = vmatpush1.bf16.xpose.msra.mxu0 0
        %1381 = vmatprep.subr.bf16.mxu0 0
        %1382 = vmatpush1.bf16.xpose.msra.mxu0 0
        %1383 = vmatprep.subr.bf16.mxu0 0
        %1384 = vmatpush1.bf16.xpose.msra.mxu0 0
        %1385 = vmatprep.subr.bf16.mxu0 0
        %1386 = vmatpush1.bf16.xpose.msra.mxu0 0
        %1387 = vmatprep.subr.bf16.mxu0 0
        %1388 = vmatpush1.bf16.xpose.msra.mxu0 0
        %1389 = vmatprep.subr.bf16.mxu0 0
        %1390 = vmatpush1.bf16.xpose.msra.mxu0 0
        %1391 = vmatprep.mubr.bf16.mxu0 0
        %1392 = vmatmul.mubr.bf16.gmra.mrb[0].mxu0 %v1258
        %v1393 = vpop.f32.mrb[0].mxu0
        %v1394 = vadd.f32 %v1325, %v1393
        %v1395 = vpop.f32.mrb[0].mxu0
        %v1396 = vpop.f32.mrb[0].mxu0
        %v1397 = vpop.f32.mrb[0].mxu0
        %1398 = vdwg.mxu0
        %v1399 = vxor.u32 %v1307, 2147483648
        %v1400 = vmul.f32 %v1399, 1.442695
        %v1401 = vpow.pop %v1400
        %v1402 = vadd.f32 %v1401, 1.0
        %v1403 = vrcp.pop %v1402
        %v1404 = vmul.f32 1.0, %v1403
        %v1405 = vmul.f32 %v1307, %v1404
        %v1406 = vmul.f32 %v1405, %v1394
        %v1407 = vld [vmem:[%s13] sm:$0xf]
        %v1408 = vld [vmem:[%s13 + $0x4] sm:$0xf]
        %v1409 = vld [vmem:[%s13 + $0x8] sm:$0xf]
        %v1410 = vld [vmem:[%s13 + $0xc] sm:$0xf]
        %v1411 = vpack.c.bf16 %v1406, %v1406
        %v1416 = vunpack.c.l.b16 %v1407
        %v1417 = vunpack.c.l.b16 %v1408
        %v1418 = vunpack.c.l.b16 %v1409
        %v1419 = vunpack.c.l.b16 %v1410
        %v1420 = vpack.c.b16 %v1417, %v1416
        %v1421 = vpack.c.b16 %v1419, %v1418
        %vm1422 = vcmask 523264
        %v1424 = vsel %vm1422, %v1411, 0
        %v1427 = vsel %vm1422, %v1420, 0
        %v1430 = vsel %vm1422, %v1421, 0
        %1432 = vmatprep.subr.bf16.mxu0 0
        %1433 = vmatpush1.bf16.xpose.msra.mxu0 %v1427
        %1434 = vmatprep.subr.bf16.mxu0 0
        %1435 = vmatpush1.bf16.xpose.msra.mxu0 %v1430
        %1436 = vmatprep.subr.bf16.mxu0 0
        %1437 = vmatpush1.bf16.xpose.msra.mxu0 0
        %1438 = vmatprep.subr.bf16.mxu0 0
        %1439 = vmatpush1.bf16.xpose.msra.mxu0 0
        %1440 = vmatprep.subr.bf16.mxu0 0
        %1441 = vmatpush1.bf16.xpose.msra.mxu0 0
        %1442 = vmatprep.subr.bf16.mxu0 0
        %1443 = vmatpush1.bf16.xpose.msra.mxu0 0
        %1444 = vmatprep.subr.bf16.mxu0 0
        %1445 = vmatpush1.bf16.xpose.msra.mxu0 0
        %1446 = vmatprep.subr.bf16.mxu0 0
        %1447 = vmatpush1.bf16.xpose.msra.mxu0 0
        %1448 = vmatprep.subr.bf16.mxu0 0
        %1449 = vmatpush1.bf16.xpose.msra.mxu0 0
        %1450 = vmatprep.subr.bf16.mxu0 0
        %1451 = vmatpush1.bf16.xpose.msra.mxu0 0
        %1452 = vmatprep.subr.bf16.mxu0 0
        %1453 = vmatpush1.bf16.xpose.msra.mxu0 0
        %1454 = vmatprep.subr.bf16.mxu0 0
        %1455 = vmatpush1.bf16.xpose.msra.mxu0 0
        %1456 = vmatprep.subr.bf16.mxu0 0
        %1457 = vmatpush1.bf16.xpose.msra.mxu0 0
        %1458 = vmatprep.subr.bf16.mxu0 0
        %1459 = vmatpush1.bf16.xpose.msra.mxu0 0
        %1460 = vmatprep.subr.bf16.mxu0 0
        %1461 = vmatpush1.bf16.xpose.msra.mxu0 0
        %1462 = vmatprep.subr.bf16.mxu0 0
        %1463 = vmatpush1.bf16.xpose.msra.mxu0 0
        %1464 = vmatprep.mubr.bf16.mxu0 0
        %1465 = vmatmul.mubr.bf16.gmra.mrb[0].mxu0 %v1424
        %v1466 = vpop.f32.mrb[0].mxu0
        %v1467 = vadd.f32 0.0, %v1466
        %v1468 = vpop.f32.mrb[0].mxu0
        %v1469 = vpop.f32.mrb[0].mxu0
        %v1470 = vpop.f32.mrb[0].mxu0
        %1471 = vdwg.mxu0
        %v1472 = vadd.f32 %v1191, %v1467
        %v1473 = vld [vmem:[%s14] sm:$0x1]
        %v1475 = vlaneseq
        %v1476 = vshrl.u32 %v1475, 7
        %v1477 = vsub.s32 0, %v1476
        %v1478 = vrot.slane %v1473, %v1477
        %v1480 = vadd.f32 %v1472, %v1478
        %1481 = vst.msk [vmem:[%s485] sm:$0xff] %vm494, %v1480
        %s1482 = sand.u32 %s357, 1
        %s1483 = scalar_lea.sflag [#allocation5], %s1482
        %s1484 = sand.u32 %s357, 1
        %s1485 = smul.addr %s1484, 8
        %s1486 = scalar_lea.vmem [#allocation4], %s1485
        // Predicated region
        $region81: #{tpu_custom_call.1} parent=79 // pred_check
          %p1487 = pneg %p367
        $region82: #{tpu_custom_call.1} parent=79 // pred_check_branch
          %1489 = sbr.rel (%p1487) target = $region84
        $region83: #{tpu_custom_call.1} parent=79 // pred_region
          %s1491 = ssub.s32 128, 128
          %1492 = vsyncadd %s1483, %s1491
          %s1493 = smul.addr %s29, 128
          %s1494 = scalar_lea.hbm %s15, %s1493
          %s1496 = sshll.u32 %s1486, 4
          %s1497 = int_to_ptr.vmem [resolvable:$true] %s1496
          %1499 = dma.vmem_to_hbm [thread:$0]  %s1497, 128, %s1494, %s1483
        $region84: #{tpu_custom_call.1} parent=79 // pred_fallthru
          _
      $region80: #{tpu_custom_call.1} parent=5 // pred_fallthru
        _
      %p1500 = scmp.le.s32.totalorder 2, %s24
      // Predicated region
      $region85: #{tpu_custom_call.1} parent=5 // pred_check
        %p1501 = pneg %p1500
      $region86: #{tpu_custom_call.1} parent=5 // pred_check_branch
        %1503 = sbr.rel (%p1501) target = $region88
      $region87: #{tpu_custom_call.1} parent=5 // pred_region
        %s1504 = ssub.s32 %s24, 2
        // Predicated region
        $region89: #{tpu_custom_call.1} parent=87 // pred_check
          %p1505 = pneg %p373
        $region90: #{tpu_custom_call.1} parent=87 // pred_check_branch
          %1507 = sbr.rel (%p1505) target = $region92
        $region91: #{tpu_custom_call.1} parent=87 // pred_region
          %s1508 = sand.u32 %s358, 1
          %s1509 = scalar_lea.sflag [#allocation5], %s1508
          %s1510 = sand.u32 %s358, 1
          %s1511 = smul.addr %s1510, 8
          %s1512 = scalar_lea.vmem [#allocation4], %s1511
          %1513 = dma.done %s1509, 128
        $region92: #{tpu_custom_call.1} parent=87 // pred_fallthru
          _
      $region88: #{tpu_custom_call.1} parent=5 // pred_fallthru
        _
    $region6: #{tpu_custom_call.1} parent=1 // loop_footer
      %s28 = sadd.s32 1, %s24
    $region7: #{tpu_custom_call.1} parent=1 // loop_footer_branch
      %23 = sbr.rel target = $region3
    $region8: #{tpu_custom_call.1} parent=1 // loop_exit
      _
    %1514 = vsyncpa [#allocation5], 1
    %s1515 = scalar_lea.sflag [#allocation5], 1
    %1516 = vsyncpa %s1515, 1

</llo_original>
